<compile_context>
chip_gen: v5e
topology: v5e:2x2
jax: 0.10.0
libtpu: 0.0.40
codegen_flags: <defaults>
</compile_context>

<pallas_src>
import math
import functools

import jax
import jax.numpy as jnp
from jax.experimental import pallas as pl
from jax.experimental.pallas import tpu as pltpu

PAD = 0


# ----------------------------------------------------------------------------
# helpers used INSIDE the kernel
# ----------------------------------------------------------------------------
def _layer_norm(x, gamma, beta, eps=1e-6):
    # THP's EncoderLayer sublayers use nn.LayerNorm(d_model, eps=1e-6), post-norm.
    mu = jnp.mean(x, axis=-1, keepdims=True)
    var = jnp.mean((x - mu) ** 2, axis=-1, keepdims=True)
    return (x - mu) * jax.lax.rsqrt(var + eps) * gamma + beta


def _gelu(x):
    # TODO(synk): PyTorch F.gelu default is exact erf-GELU; erf lowering in Mosaic is
    # not guaranteed, so we use the tanh approximation (max abs err ~1e-3).
    c = math.sqrt(2.0 / math.pi)
    return 0.5 * x * (1.0 + jnp.tanh(c * (x + 0.044715 * x * x * x)))


# ----------------------------------------------------------------------------
# Fused encoder kernel: temporal enc + n_layers x (masked MHA + FFN), post-norm.
# One grid step == one block of bB sequences.
# ----------------------------------------------------------------------------
def encoder_kernel(emb_ref, time_ref, npm_ref, keypad_ref, invpos_ref, phase_ref,
                   wqkv_ref, wo_ref, bo_ref, g1_ref, be1_ref,
                   w1_ref, bf1_ref, w2_ref, bf2_ref, g2_ref, be2_ref,
                   out_ref, *, n_head, d_k, d_v):
    f32 = jnp.float32
    bf16 = jnp.bfloat16

    n_layers = wqkv_ref.shape[0]
    bB, L, D = emb_ref.shape
    R = bB * L
    Hdk = n_head * d_k
    Hdv = n_head * d_v

    npm3 = npm_ref[...]                                                   # (bB, L, 1)
    npm2 = npm3.reshape(R, 1)

    # temporal encoding: sin(t/pos + phase); phase = pi/2 on odd channels == cos
    tem = jnp.sin(time_ref[...] * invpos_ref[...][None]
                  + phase_ref[...][None]) * npm3                          # (bB, L, D)
    tem2 = tem.reshape(R, D)

    # attention mask built in-kernel (no (B,L,L) float32 array shipped from HBM):
    # masked = future position (col > row)  OR  key is a PAD token.
    row = jax.lax.broadcasted_iota(jnp.int32, (L, L), 0)
    col = jax.lax.broadcasted_iota(jnp.int32, (L, L), 1)
    mask = jnp.logical_or((col > row)[None, :, :], keypad_ref[...] > 0)   # (bB, L, L)

    x2 = emb_ref[...].reshape(R, D)                                       # (R, D) f32

    for l in range(n_layers):          # static unroll; all weights VMEM-resident
        # "enc_output += tem_enc"
        x2 = x2 + tem2
        residual = x2
        xb = x2.astype(bf16)

        # ---- fused q/k/v projection: one lane-dense matmul per layer
        # (1/sqrt(d_k) pre-folded into the q columns of wqkv)
        qkv = jnp.dot(xb, wqkv_ref[l], preferred_element_type=f32)        # (R, 2Hdk+Hdv)
        qkv3 = qkv.reshape(bB, L, 2 * Hdk + Hdv)

        ctx_heads = []
        for h in range(n_head):        # static unroll over heads
            qh = qkv3[:, :, h * d_k:(h + 1) * d_k].astype(bf16)
            kh = qkv3[:, :, Hdk + h * d_k:Hdk + (h + 1) * d_k].astype(bf16)
            vh = qkv3[:, :, 2 * Hdk + h * d_v:2 * Hdk + (h + 1) * d_v].astype(bf16)

            s = jnp.einsum('bik,bjk->bij', qh, kh,
                           preferred_element_type=f32)                    # (bB, L, L)
            s = jnp.where(mask, f32(-1e9), s)
            # Fully-masked (pad) query rows become a uniform softmax over garbage;
            # they are zeroed by non_pad_mask below; max-subtraction keeps exp finite.
            m = jnp.max(s, axis=-1, keepdims=True)
            e = jnp.exp(s - m)
            den = jnp.sum(e, axis=-1, keepdims=True)
            p = (e * pl.reciprocal(den, approx=True)).astype(bf16)        # (bB, L, L)
            ctx_heads.append(jnp.einsum('bij,bjd->bid', p, vh,
                                        preferred_element_type=f32).astype(bf16))

        ctx = jnp.concatenate(ctx_heads, axis=-1).reshape(R, Hdv)         # (R, H*dv)
        attn = jnp.dot(ctx, wo_ref[l], preferred_element_type=f32) + bo_ref[l]

        x2 = _layer_norm(attn + residual, g1_ref[l], be1_ref[l]) * npm2

        # ---- position-wise FFN (post-norm)
        res2 = x2
        h1 = jnp.dot(x2.astype(bf16), w1_ref[l],
                     preferred_element_type=f32) + bf1_ref[l]             # (R, d_inner)
        h1 = _gelu(h1).astype(bf16)
        y = jnp.dot(h1, w2_ref[l], preferred_element_type=f32) + bf2_ref[l]
        x2 = _layer_norm(y + res2, g2_ref[l], be2_ref[l]) * npm2

    out_ref[...] = x2.reshape(bB, L, D)


# ----------------------------------------------------------------------------
# plain-JAX glue: Sinkhorn (tiny parameter transform)
# ----------------------------------------------------------------------------
def _logsumexp(x, axis):
    m = jnp.max(x, axis=axis, keepdims=True)
    return m + jnp.log(jnp.sum(jnp.exp(x - m), axis=axis, keepdims=True))


def sinkhorn(coupling, n_iter=100, tau=0.1):
    # TODO(synk): only the is_param=False branch of CoupledEmbedding.sinkhorn is
    # implemented (the coupling-parameter path used by this Encoder instantiation).
    log_alpha = -coupling / tau

    def body(_, la):
        la = la - _logsumexp(la, axis=-1)
        la = la - _logsumexp(la, axis=-2)
        return la

    return jnp.exp(jax.lax.fori_loop(0, n_iter, body, log_alpha))


def _pick_batch_block(B, L, D, d_inner, n_head):
    """Largest divisor of B whose per-step f32 activation footprint stays modest."""
    budget = 6 * 1024 * 1024
    best = 1
    for bb in range(1, min(B, 32) + 1):
        if B % bb:
            continue
        acts = bb * L * (n_head * L + 6 * D + 2 * d_inner) * 4
        if acts <= budget:
            best = bb
    return best


# ----------------------------------------------------------------------------
# Encoder.forward
# ----------------------------------------------------------------------------
def encoder_forward(params, process_idx, event_type, event_time, non_pad_mask, cfg):
    B, L = event_type.shape
    D = cfg['d_model']
    H, d_k, d_v = cfg['n_head'], cfg['d_k'], cfg['d_v']
    d_inner = cfg['d_inner']
    bf16 = jnp.bfloat16

    # ---- CoupledEmbedding with the Sinkhorn transport folded into the weight:
    #      emb = onehot_aligned @ W.T  ==  W_eff[event_type]  (gather, no one-hot)
    trans = sinkhorn(params['coupling'], n_iter=100)                      # (nt1, nt0)
    wt = params['w_emb'].T                                                # (nt0+1, D)
    if process_idx == 0:
        w_eff = wt
    else:
        w_eff = jnp.concatenate([wt[0:1], jnp.dot(trans, wt[1:])], axis=0)  # (nt1+1, D)
    emb = jnp.take(w_eff, event_type, axis=0).astype(jnp.float32)         # (B, L, D)

    # ---- per-batch small inputs
    time3 = event_time[:, :, None].astype(jnp.float32)                    # (B, L, 1)
    npm = non_pad_mask.astype(jnp.float32)                                # (B, L, 1)
    keypad = (event_type == PAD).astype(jnp.int32)[:, None, :]            # (B, 1, L)

    inv_pos = (1.0 / params['position_vec'])[None, :].astype(jnp.float32)  # (1, D)
    ch = jnp.arange(D)
    phase = jnp.where(ch % 2 == 0, 0.0, jnp.pi / 2.0)[None, :].astype(jnp.float32)

    # ---- stacked layer weights; q/k/v fused into one [D, H*(2dk+dv)] matrix.
    def stack(name):
        return jnp.stack([lp[name] for lp in params['layers']])

    scale = 1.0 / math.sqrt(d_k)   # q / temperature folded into wq columns
    wqkv = jnp.concatenate([stack('wq') * scale, stack('wk'), stack('wv')],
                           axis=-1).astype(bf16)                          # (nl, D, E)
    wo_s = stack('wo').astype(bf16)                                       # (nl, H*dv, D)
    w1_s = stack('w1').astype(bf16)
    w2_s = stack('w2').astype(bf16)
    bo_s, g1_s, be1_s = stack('bo'), stack('ln1_g'), stack('ln1_b')
    bf1_s, bf2_s = stack('b1'), stack('b2')
    g2_s, be2_s = stack('ln2_g'), stack('ln2_b')

    bB = _pick_batch_block(B, L, D, d_inner, H)

    def batch_spec(shape):
        nd = len(shape)
        return pl.BlockSpec((bB,) + shape, lambda b, nd=nd: (b,) + (0,) * nd)

    def const_spec(arr):
        nd = arr.ndim
        return pl.BlockSpec(arr.shape, lambda b, nd=nd: (0,) * nd)

    weight_args = (wqkv, wo_s, bo_s, g1_s, be1_s,
                   w1_s, bf1_s, w2_s, bf2_s, g2_s, be2_s)

    kernel = functools.partial(encoder_kernel, n_head=H, d_k=d_k, d_v=d_v)

    return pl.pallas_call(
        kernel,
        out_shape=jax.ShapeDtypeStruct((B, L, D), jnp.float32),
        grid=(B // bB,),
        in_specs=[batch_spec((L, D)),          # emb
                  batch_spec((L, 1)),          # event time
                  batch_spec((L, 1)),          # non-pad mask
                  batch_spec((1, L)),          # key-pad row (int32)
                  const_spec(inv_pos), const_spec(phase)]
                 + [const_spec(a) for a in weight_args],
        out_specs=pl.BlockSpec((bB, L, D), lambda b: (b, 0, 0)),
        compiler_params=pltpu.CompilerParams(dimension_semantics=("parallel",)),
    )(emb, time3, npm, keypad, inv_pos, phase, *weight_args)


# ----------------------------------------------------------------------------
# deterministic parameter construction (synthetic, no checkpoint)
# ----------------------------------------------------------------------------
def init_params(key, cfg):
    d_model, d_inner = cfg['d_model'], cfg['d_inner']
    n_head, d_k, d_v = cfg['n_head'], cfg['d_k'], cfg['d_v']
    nt0, nt1 = cfg['num_types']
    keys = jax.random.split(key, 2 + cfg['n_layers'])

    def dense(k, shape):
        return jax.random.normal(k, shape, jnp.float32) / math.sqrt(shape[0])

    params = {}
    params['position_vec'] = jnp.array(
        [math.pow(10000.0, 2.0 * (i // 2) / d_model) for i in range(d_model)],
        dtype=jnp.float32)
    params['coupling'] = jax.random.normal(keys[0], (nt1, nt0), jnp.float32)
    params['w_emb'] = dense(keys[1], (d_model, nt0 + 1))   # torch layout (out, in)

    layers = []
    for li in range(cfg['n_layers']):
        lk = jax.random.split(keys[2 + li], 6)
        layers.append(dict(
            wq=dense(lk[0], (d_model, n_head * d_k)),
            wk=dense(lk[1], (d_model, n_head * d_k)),
            wv=dense(lk[2], (d_model, n_head * d_v)),
            wo=dense(lk[3], (n_head * d_v, d_model)),
            bo=jnp.zeros((1, d_model), jnp.float32),
            ln1_g=jnp.ones((1, d_model), jnp.float32),
            ln1_b=jnp.zeros((1, d_model), jnp.float32),
            w1=dense(lk[4], (d_model, d_inner)),
            b1=jnp.zeros((1, d_inner), jnp.float32),
            w2=dense(lk[5], (d_inner, d_model)),
            b2=jnp.zeros((1, d_model), jnp.float32),
            ln2_g=jnp.ones((1, d_model), jnp.float32),
            ln2_b=jnp.zeros((1, d_model), jnp.float32),
        ))
    params['layers'] = layers
    return params


if __name__ == "__main__":
    cfg = dict(num_types=[4, 5], d_model=32, d_inner=64, n_layers=2,
               n_head=2, d_k=16, d_v=16)
    B, L = 2, 8
    process_idx = 1

    key = jax.random.PRNGKey(0)
    kp, kt, ke = jax.random.split(key, 3)
    params = init_params(kp, cfg)

    V = cfg['num_types'][process_idx] + 1
    event_type = jax.random.randint(kt, (B, L), 0, V).astype(jnp.int32)
    non_pad_mask = (event_type != PAD).astype(jnp.float32)[:, :, None]     # (B, L, 1)
    event_time = (jnp.cumsum(jax.random.uniform(ke, (B, L), jnp.float32), axis=1)
                  * non_pad_mask[:, :, 0])

    out = encoder_forward(params, process_idx, event_type, event_time,
                          non_pad_mask, cfg)
    out = jax.block_until_ready(out)
    assert out.shape == (B, L, cfg['d_model'])
    assert bool(jnp.isfinite(out).all())
    print("KERNEL_OK")
</pallas_src>

<mosaic_0001>
module attributes {stable_mosaic.version = 11 : i64} {
  func.func @encoder_kernel(%arg0: i32, %arg1: memref<2x8x32xf32, #tpu.memory_space<vmem>>, %arg2: memref<2x8x1xf32, #tpu.memory_space<vmem>>, %arg3: memref<2x8x1xf32, #tpu.memory_space<vmem>>, %arg4: memref<2x1x8xi32, #tpu.memory_space<vmem>>, %arg5: memref<1x32xf32, #tpu.memory_space<vmem>>, %arg6: memref<1x32xf32, #tpu.memory_space<vmem>>, %arg7: memref<2x32x96xbf16, #tpu.memory_space<vmem>>, %arg8: memref<2x32x32xbf16, #tpu.memory_space<vmem>>, %arg9: memref<2x1x32xf32, #tpu.memory_space<vmem>>, %arg10: memref<2x1x32xf32, #tpu.memory_space<vmem>>, %arg11: memref<2x1x32xf32, #tpu.memory_space<vmem>>, %arg12: memref<2x32x64xbf16, #tpu.memory_space<vmem>>, %arg13: memref<2x1x64xf32, #tpu.memory_space<vmem>>, %arg14: memref<2x64x32xbf16, #tpu.memory_space<vmem>>, %arg15: memref<2x1x32xf32, #tpu.memory_space<vmem>>, %arg16: memref<2x1x32xf32, #tpu.memory_space<vmem>>, %arg17: memref<2x1x32xf32, #tpu.memory_space<vmem>>, %arg18: memref<2x8x32xf32, #tpu.memory_space<vmem>>) attributes {dimension_semantics = [#tpu.dimension_semantics<parallel>], iteration_bounds = array<i64: 1>, scalar_prefetch = 0 : i64, scratch_operands = 0 : i64, tpu.core_type = #tpu.core_type<tc>, window_params = [{transform_indices = @transform_0, window_bounds = array<i64: 2, 8, 32>}, {transform_indices = @transform_1, window_bounds = array<i64: 2, 8, 1>}, {transform_indices = @transform_2, window_bounds = array<i64: 2, 8, 1>}, {transform_indices = @transform_3, window_bounds = array<i64: 2, 1, 8>}, {pipeline_mode = #tpu.pipeline_mode<synchronous>, transform_indices = @transform_4, window_bounds = array<i64: 1, 32>}, {pipeline_mode = #tpu.pipeline_mode<synchronous>, transform_indices = @transform_5, window_bounds = array<i64: 1, 32>}, {pipeline_mode = #tpu.pipeline_mode<synchronous>, transform_indices = @transform_6, window_bounds = array<i64: 2, 32, 96>}, {pipeline_mode = #tpu.pipeline_mode<synchronous>, transform_indices = @transform_7, window_bounds = array<i64: 2, 32, 32>}, {pipeline_mode = #tpu.pipeline_mode<synchronous>, transform_indices = @transform_8, window_bounds = array<i64: 2, 1, 32>}, {pipeline_mode = #tpu.pipeline_mode<synchronous>, transform_indices = @transform_9, window_bounds = array<i64: 2, 1, 32>}, {pipeline_mode = #tpu.pipeline_mode<synchronous>, transform_indices = @transform_10, window_bounds = array<i64: 2, 1, 32>}, {pipeline_mode = #tpu.pipeline_mode<synchronous>, transform_indices = @transform_11, window_bounds = array<i64: 2, 32, 64>}, {pipeline_mode = #tpu.pipeline_mode<synchronous>, transform_indices = @transform_12, window_bounds = array<i64: 2, 1, 64>}, {pipeline_mode = #tpu.pipeline_mode<synchronous>, transform_indices = @transform_13, window_bounds = array<i64: 2, 64, 32>}, {pipeline_mode = #tpu.pipeline_mode<synchronous>, transform_indices = @transform_14, window_bounds = array<i64: 2, 1, 32>}, {pipeline_mode = #tpu.pipeline_mode<synchronous>, transform_indices = @transform_15, window_bounds = array<i64: 2, 1, 32>}, {pipeline_mode = #tpu.pipeline_mode<synchronous>, transform_indices = @transform_16, window_bounds = array<i64: 2, 1, 32>}, {transform_indices = @transform_17, window_bounds = array<i64: 2, 8, 32>}]} {
    %c0 = arith.constant 0 : index
    %c0_0 = arith.constant 0 : index
    %c0_1 = arith.constant 0 : index
    %0 = vector.load %arg3[%c0, %c0_0, %c0_1] : memref<2x8x1xf32, #tpu.memory_space<vmem>>, vector<2x8x1xf32>
    %1 = vector.shape_cast %0 : vector<2x8x1xf32> to vector<16x1xf32>
    %c0_2 = arith.constant 0 : index
    %c0_3 = arith.constant 0 : index
    %c0_4 = arith.constant 0 : index
    %2 = vector.load %arg2[%c0_2, %c0_3, %c0_4] : memref<2x8x1xf32, #tpu.memory_space<vmem>>, vector<2x8x1xf32>
    %c0_5 = arith.constant 0 : index
    %c0_6 = arith.constant 0 : index
    %3 = vector.load %arg5[%c0_5, %c0_6] : memref<1x32xf32, #tpu.memory_space<vmem>>, vector<1x32xf32>
    %4 = vector.shape_cast %3 : vector<1x32xf32> to vector<1x1x32xf32>
    %5 = vector.broadcast %2 : vector<2x8x1xf32> to vector<2x8x32xf32>
    %6 = vector.broadcast %4 : vector<1x1x32xf32> to vector<2x8x32xf32>
    %7 = arith.mulf %5, %6 : vector<2x8x32xf32>
    %c0_7 = arith.constant 0 : index
    %c0_8 = arith.constant 0 : index
    %8 = vector.load %arg6[%c0_7, %c0_8] : memref<1x32xf32, #tpu.memory_space<vmem>>, vector<1x32xf32>
    %9 = vector.shape_cast %8 : vector<1x32xf32> to vector<1x1x32xf32>
    %10 = vector.broadcast %9 : vector<1x1x32xf32> to vector<2x8x32xf32>
    %11 = arith.addf %7, %10 : vector<2x8x32xf32>
    %12 = math.sin %11 : vector<2x8x32xf32>
    %13 = vector.broadcast %0 : vector<2x8x1xf32> to vector<2x8x32xf32>
    %14 = arith.mulf %12, %13 : vector<2x8x32xf32>
    %15 = vector.shape_cast %14 : vector<2x8x32xf32> to vector<16x32xf32>
    %16 = tpu.iota {dimensions = array<i32: 0>} : vector<8x8xi32>
    %17 = tpu.iota {dimensions = array<i32: 1>} : vector<8x8xi32>
    %18 = arith.cmpi sgt, %17, %16 : vector<8x8xi32>
    %19 = vector.shape_cast %18 : vector<8x8xi1> to vector<1x8x8xi1>
    %c0_9 = arith.constant 0 : index
    %c0_10 = arith.constant 0 : index
    %c0_11 = arith.constant 0 : index
    %20 = vector.load %arg4[%c0_9, %c0_10, %c0_11] : memref<2x1x8xi32, #tpu.memory_space<vmem>>, vector<2x1x8xi32>
    %c0_i32 = arith.constant 0 : i32
    %21 = vector.broadcast %c0_i32 : i32 to vector<2x1x8xi32>
    %22 = arith.cmpi sgt, %20, %21 : vector<2x1x8xi32>
    %23 = vector.broadcast %19 : vector<1x8x8xi1> to vector<2x8x8xi1>
    %24 = vector.broadcast %22 : vector<2x1x8xi1> to vector<2x8x8xi1>
    %25 = arith.ori %23, %24 : vector<2x8x8xi1>
    %c0_12 = arith.constant 0 : index
    %c0_13 = arith.constant 0 : index
    %c0_14 = arith.constant 0 : index
    %26 = vector.load %arg1[%c0_12, %c0_13, %c0_14] : memref<2x8x32xf32, #tpu.memory_space<vmem>>, vector<2x8x32xf32>
    %27 = vector.shape_cast %26 : vector<2x8x32xf32> to vector<16x32xf32>
    %28 = arith.addf %27, %15 : vector<16x32xf32>
    %29 = arith.truncf %28 : vector<16x32xf32> to vector<16x32xbf16>
    %c0_15 = arith.constant 0 : index
    %c0_16 = arith.constant 0 : index
    %c0_17 = arith.constant 0 : index
    %30 = vector.load %arg7[%c0_15, %c0_16, %c0_17] : memref<2x32x96xbf16, #tpu.memory_space<vmem>>, vector<1x32x96xbf16>
    %31 = vector.shape_cast %30 : vector<1x32x96xbf16> to vector<32x96xbf16>
    %cst = arith.constant dense<0.000000e+00> : vector<16x96xf32>
    %32 = tpu.matmul %29, %31, %cst {dimension_numbers = #tpu.dot_dimension_numbers<[1], [0], [0], [1], [0, 0, 1, 1], [], []>} : vector<16x32xbf16>, vector<32x96xbf16>, vector<16x96xf32> -> vector<16x96xf32>
    %33 = vector.shape_cast %32 : vector<16x96xf32> to vector<2x8x96xf32>
    %34 = vector.extract_strided_slice %33 {offsets = [0, 0, 0], sizes = [2, 8, 16], strides = [1, 1, 1]} : vector<2x8x96xf32> to vector<2x8x16xf32>
    %35 = arith.truncf %34 : vector<2x8x16xf32> to vector<2x8x16xbf16>
    %36 = vector.extract_strided_slice %33 {offsets = [0, 0, 32], sizes = [2, 8, 16], strides = [1, 1, 1]} : vector<2x8x96xf32> to vector<2x8x16xf32>
    %37 = arith.truncf %36 : vector<2x8x16xf32> to vector<2x8x16xbf16>
    %38 = vector.extract_strided_slice %33 {offsets = [0, 0, 64], sizes = [2, 8, 16], strides = [1, 1, 1]} : vector<2x8x96xf32> to vector<2x8x16xf32>
    %39 = arith.truncf %38 : vector<2x8x16xf32> to vector<2x8x16xbf16>
    "tpu.trace_start"() <{level = 10 : i32, message = "bik,bjk->bij"}> : () -> ()
    %cst_18 = arith.constant dense<0.000000e+00> : vector<2x8x8xf32>
    %40 = tpu.matmul %35, %37, %cst_18 {dimension_numbers = #tpu.dot_dimension_numbers<[2], [2], [1], [1], [0, 0, 0, 1, 1, 1], [0], [0]>} : vector<2x8x16xbf16>, vector<2x8x16xbf16>, vector<2x8x8xf32> -> vector<2x8x8xf32>
    %cst_19 = arith.constant -1.000000e+09 : f32
    "tpu.trace_stop"() : () -> ()
    %41 = vector.broadcast %cst_19 : f32 to vector<2x8x8xf32>
    %42 = arith.select %25, %41, %40 : vector<2x8x8xi1>, vector<2x8x8xf32>
    %cst_20 = arith.constant dense<0xFF800000> : vector<2x8xf32>
    %43 = vector.multi_reduction <maximumf>, %42, %cst_20 [2] : vector<2x8x8xf32> to vector<2x8xf32>
    %44 = vector.shape_cast %43 : vector<2x8xf32> to vector<2x8x1xf32>
    %45 = vector.broadcast %44 : vector<2x8x1xf32> to vector<2x8x8xf32>
    %46 = arith.subf %42, %45 : vector<2x8x8xf32>
    %47 = math.exp %46 : vector<2x8x8xf32>
    %cst_21 = arith.constant dense<0.000000e+00> : vector<2x8xf32>
    %48 = vector.multi_reduction <add>, %47, %cst_21 [2] : vector<2x8x8xf32> to vector<2x8xf32>
    %49 = vector.shape_cast %48 : vector<2x8xf32> to vector<2x8x1xf32>
    %50 = tpu.reciprocal %49 {approx = true} : vector<2x8x1xf32> -> vector<2x8x1xf32>
    %51 = vector.broadcast %50 : vector<2x8x1xf32> to vector<2x8x8xf32>
    %52 = arith.mulf %47, %51 : vector<2x8x8xf32>
    %53 = arith.truncf %52 : vector<2x8x8xf32> to vector<2x8x8xbf16>
    "tpu.trace_start"() <{level = 10 : i32, message = "bij,bjd->bid"}> : () -> ()
    %cst_22 = arith.constant dense<0.000000e+00> : vector<2x8x16xf32>
    %54 = tpu.matmul %53, %39, %cst_22 {dimension_numbers = #tpu.dot_dimension_numbers<[2], [1], [1], [2], [0, 0, 0, 1, 1, 2], [0], [0]>} : vector<2x8x8xbf16>, vector<2x8x16xbf16>, vector<2x8x16xf32> -> vector<2x8x16xf32>
    "tpu.trace_stop"() : () -> ()
    %55 = arith.truncf %54 : vector<2x8x16xf32> to vector<2x8x16xbf16>
    %56 = vector.extract_strided_slice %33 {offsets = [0, 0, 16], sizes = [2, 8, 16], strides = [1, 1, 1]} : vector<2x8x96xf32> to vector<2x8x16xf32>
    %57 = arith.truncf %56 : vector<2x8x16xf32> to vector<2x8x16xbf16>
    %58 = vector.extract_strided_slice %33 {offsets = [0, 0, 48], sizes = [2, 8, 16], strides = [1, 1, 1]} : vector<2x8x96xf32> to vector<2x8x16xf32>
    %59 = arith.truncf %58 : vector<2x8x16xf32> to vector<2x8x16xbf16>
    %60 = vector.extract_strided_slice %33 {offsets = [0, 0, 80], sizes = [2, 8, 16], strides = [1, 1, 1]} : vector<2x8x96xf32> to vector<2x8x16xf32>
    %61 = arith.truncf %60 : vector<2x8x16xf32> to vector<2x8x16xbf16>
    "tpu.trace_start"() <{level = 10 : i32, message = "bik,bjk->bij"}> : () -> ()
    %cst_23 = arith.constant dense<0.000000e+00> : vector<2x8x8xf32>
    %62 = tpu.matmul %57, %59, %cst_23 {dimension_numbers = #tpu.dot_dimension_numbers<[2], [2], [1], [1], [0, 0, 0, 1, 1, 1], [0], [0]>} : vector<2x8x16xbf16>, vector<2x8x16xbf16>, vector<2x8x8xf32> -> vector<2x8x8xf32>
    %cst_24 = arith.constant -1.000000e+09 : f32
    "tpu.trace_stop"() : () -> ()
    %63 = vector.broadcast %cst_24 : f32 to vector<2x8x8xf32>
    %64 = arith.select %25, %63, %62 : vector<2x8x8xi1>, vector<2x8x8xf32>
    %cst_25 = arith.constant dense<0xFF800000> : vector<2x8xf32>
    %65 = vector.multi_reduction <maximumf>, %64, %cst_25 [2] : vector<2x8x8xf32> to vector<2x8xf32>
    %66 = vector.shape_cast %65 : vector<2x8xf32> to vector<2x8x1xf32>
    %67 = vector.broadcast %66 : vector<2x8x1xf32> to vector<2x8x8xf32>
    %68 = arith.subf %64, %67 : vector<2x8x8xf32>
    %69 = math.exp %68 : vector<2x8x8xf32>
    %cst_26 = arith.constant dense<0.000000e+00> : vector<2x8xf32>
    %70 = vector.multi_reduction <add>, %69, %cst_26 [2] : vector<2x8x8xf32> to vector<2x8xf32>
    %71 = vector.shape_cast %70 : vector<2x8xf32> to vector<2x8x1xf32>
    %72 = tpu.reciprocal %71 {approx = true} : vector<2x8x1xf32> -> vector<2x8x1xf32>
    %73 = vector.broadcast %72 : vector<2x8x1xf32> to vector<2x8x8xf32>
    %74 = arith.mulf %69, %73 : vector<2x8x8xf32>
    %75 = arith.truncf %74 : vector<2x8x8xf32> to vector<2x8x8xbf16>
    "tpu.trace_start"() <{level = 10 : i32, message = "bij,bjd->bid"}> : () -> ()
    %cst_27 = arith.constant dense<0.000000e+00> : vector<2x8x16xf32>
    %76 = tpu.matmul %75, %61, %cst_27 {dimension_numbers = #tpu.dot_dimension_numbers<[2], [1], [1], [2], [0, 0, 0, 1, 1, 2], [0], [0]>} : vector<2x8x8xbf16>, vector<2x8x16xbf16>, vector<2x8x16xf32> -> vector<2x8x16xf32>
    "tpu.trace_stop"() : () -> ()
    %77 = arith.truncf %76 : vector<2x8x16xf32> to vector<2x8x16xbf16>
    %78 = tpu.concatenate %55, %77 in 2 : vector<2x8x16xbf16>, vector<2x8x16xbf16> -> vector<2x8x32xbf16>
    %79 = vector.shape_cast %78 : vector<2x8x32xbf16> to vector<16x32xbf16>
    %c0_28 = arith.constant 0 : index
    %c0_29 = arith.constant 0 : index
    %c0_30 = arith.constant 0 : index
    %80 = vector.load %arg8[%c0_28, %c0_29, %c0_30] : memref<2x32x32xbf16, #tpu.memory_space<vmem>>, vector<1x32x32xbf16>
    %81 = vector.shape_cast %80 : vector<1x32x32xbf16> to vector<32x32xbf16>
    %cst_31 = arith.constant dense<0.000000e+00> : vector<16x32xf32>
    %82 = tpu.matmul %79, %81, %cst_31 {dimension_numbers = #tpu.dot_dimension_numbers<[1], [0], [0], [1], [0, 0, 1, 1], [], []>} : vector<16x32xbf16>, vector<32x32xbf16>, vector<16x32xf32> -> vector<16x32xf32>
    %c0_32 = arith.constant 0 : index
    %c0_33 = arith.constant 0 : index
    %c0_34 = arith.constant 0 : index
    %83 = vector.load %arg9[%c0_32, %c0_33, %c0_34] : memref<2x1x32xf32, #tpu.memory_space<vmem>>, vector<1x1x32xf32>
    %84 = vector.shape_cast %83 : vector<1x1x32xf32> to vector<1x32xf32>
    %85 = vector.broadcast %84 : vector<1x32xf32> to vector<16x32xf32>
    %86 = arith.addf %82, %85 : vector<16x32xf32>
    %87 = arith.addf %86, %28 : vector<16x32xf32>
    %c0_35 = arith.constant 0 : index
    %c0_36 = arith.constant 0 : index
    %c0_37 = arith.constant 0 : index
    %88 = vector.load %arg10[%c0_35, %c0_36, %c0_37] : memref<2x1x32xf32, #tpu.memory_space<vmem>>, vector<1x1x32xf32>
    %89 = vector.shape_cast %88 : vector<1x1x32xf32> to vector<1x32xf32>
    %c0_38 = arith.constant 0 : index
    %c0_39 = arith.constant 0 : index
    %c0_40 = arith.constant 0 : index
    %90 = vector.load %arg11[%c0_38, %c0_39, %c0_40] : memref<2x1x32xf32, #tpu.memory_space<vmem>>, vector<1x1x32xf32>
    %91 = vector.shape_cast %90 : vector<1x1x32xf32> to vector<1x32xf32>
    %cst_41 = arith.constant dense<0.000000e+00> : vector<16xf32>
    %92 = vector.multi_reduction <add>, %87, %cst_41 [1] : vector<16x32xf32> to vector<16xf32>
    %93 = vector.shape_cast %92 : vector<16xf32> to vector<16x1xf32>
    %cst_42 = arith.constant 3.200000e+01 : f32
    %94 = vector.broadcast %cst_42 : f32 to vector<16x1xf32>
    %95 = arith.divf %93, %94 : vector<16x1xf32>
    %96 = vector.broadcast %95 : vector<16x1xf32> to vector<16x32xf32>
    %97 = arith.subf %87, %96 : vector<16x32xf32>
    %98 = arith.mulf %97, %97 : vector<16x32xf32>
    %cst_43 = arith.constant dense<0.000000e+00> : vector<16xf32>
    %99 = vector.multi_reduction <add>, %98, %cst_43 [1] : vector<16x32xf32> to vector<16xf32>
    %100 = vector.shape_cast %99 : vector<16xf32> to vector<16x1xf32>
    %cst_44 = arith.constant 3.200000e+01 : f32
    %101 = vector.broadcast %cst_44 : f32 to vector<16x1xf32>
    %102 = arith.divf %100, %101 : vector<16x1xf32>
    %103 = vector.broadcast %95 : vector<16x1xf32> to vector<16x32xf32>
    %104 = arith.subf %87, %103 : vector<16x32xf32>
    %cst_45 = arith.constant 9.99999997E-7 : f32
    %105 = vector.broadcast %cst_45 : f32 to vector<16x1xf32>
    %106 = arith.addf %102, %105 : vector<16x1xf32>
    %107 = math.rsqrt %106 : vector<16x1xf32>
    %108 = vector.broadcast %107 : vector<16x1xf32> to vector<16x32xf32>
    %109 = arith.mulf %104, %108 : vector<16x32xf32>
    %110 = vector.broadcast %89 : vector<1x32xf32> to vector<16x32xf32>
    %111 = arith.mulf %109, %110 : vector<16x32xf32>
    %112 = vector.broadcast %91 : vector<1x32xf32> to vector<16x32xf32>
    %113 = arith.addf %111, %112 : vector<16x32xf32>
    %114 = vector.broadcast %1 : vector<16x1xf32> to vector<16x32xf32>
    %115 = arith.mulf %113, %114 : vector<16x32xf32>
    %116 = arith.truncf %115 : vector<16x32xf32> to vector<16x32xbf16>
    %c0_46 = arith.constant 0 : index
    %c0_47 = arith.constant 0 : index
    %c0_48 = arith.constant 0 : index
    %117 = vector.load %arg12[%c0_46, %c0_47, %c0_48] : memref<2x32x64xbf16, #tpu.memory_space<vmem>>, vector<1x32x64xbf16>
    %118 = vector.shape_cast %117 : vector<1x32x64xbf16> to vector<32x64xbf16>
    %cst_49 = arith.constant dense<0.000000e+00> : vector<16x64xf32>
    %119 = tpu.matmul %116, %118, %cst_49 {dimension_numbers = #tpu.dot_dimension_numbers<[1], [0], [0], [1], [0, 0, 1, 1], [], []>} : vector<16x32xbf16>, vector<32x64xbf16>, vector<16x64xf32> -> vector<16x64xf32>
    %c0_50 = arith.constant 0 : index
    %c0_51 = arith.constant 0 : index
    %c0_52 = arith.constant 0 : index
    %120 = vector.load %arg13[%c0_50, %c0_51, %c0_52] : memref<2x1x64xf32, #tpu.memory_space<vmem>>, vector<1x1x64xf32>
    %121 = vector.shape_cast %120 : vector<1x1x64xf32> to vector<1x64xf32>
    %122 = vector.broadcast %121 : vector<1x64xf32> to vector<16x64xf32>
    %123 = arith.addf %119, %122 : vector<16x64xf32>
    %cst_53 = arith.constant 5.000000e-01 : f32
    %124 = vector.broadcast %cst_53 : f32 to vector<16x64xf32>
    %125 = arith.mulf %124, %123 : vector<16x64xf32>
    %cst_54 = arith.constant 4.471500e-02 : f32
    %126 = vector.broadcast %cst_54 : f32 to vector<16x64xf32>
    %127 = arith.mulf %126, %123 : vector<16x64xf32>
    %128 = arith.mulf %127, %123 : vector<16x64xf32>
    %129 = arith.mulf %128, %123 : vector<16x64xf32>
    %130 = arith.addf %123, %129 : vector<16x64xf32>
    %cst_55 = arith.constant 0.797884583 : f32
    %131 = vector.broadcast %cst_55 : f32 to vector<16x64xf32>
    %132 = arith.mulf %131, %130 : vector<16x64xf32>
    %133 = math.tanh %132 : vector<16x64xf32>
    %cst_56 = arith.constant 1.000000e+00 : f32
    %134 = vector.broadcast %cst_56 : f32 to vector<16x64xf32>
    %135 = arith.addf %134, %133 : vector<16x64xf32>
    %136 = arith.mulf %125, %135 : vector<16x64xf32>
    %137 = arith.truncf %136 : vector<16x64xf32> to vector<16x64xbf16>
    %c0_57 = arith.constant 0 : index
    %c0_58 = arith.constant 0 : index
    %c0_59 = arith.constant 0 : index
    %138 = vector.load %arg14[%c0_57, %c0_58, %c0_59] : memref<2x64x32xbf16, #tpu.memory_space<vmem>>, vector<1x64x32xbf16>
    %139 = vector.shape_cast %138 : vector<1x64x32xbf16> to vector<64x32xbf16>
    %cst_60 = arith.constant dense<0.000000e+00> : vector<16x32xf32>
    %140 = tpu.matmul %137, %139, %cst_60 {dimension_numbers = #tpu.dot_dimension_numbers<[1], [0], [0], [1], [0, 0, 1, 1], [], []>} : vector<16x64xbf16>, vector<64x32xbf16>, vector<16x32xf32> -> vector<16x32xf32>
    %c0_61 = arith.constant 0 : index
    %c0_62 = arith.constant 0 : index
    %c0_63 = arith.constant 0 : index
    %141 = vector.load %arg15[%c0_61, %c0_62, %c0_63] : memref<2x1x32xf32, #tpu.memory_space<vmem>>, vector<1x1x32xf32>
    %142 = vector.shape_cast %141 : vector<1x1x32xf32> to vector<1x32xf32>
    %143 = vector.broadcast %142 : vector<1x32xf32> to vector<16x32xf32>
    %144 = arith.addf %140, %143 : vector<16x32xf32>
    %145 = arith.addf %144, %115 : vector<16x32xf32>
    %c0_64 = arith.constant 0 : index
    %c0_65 = arith.constant 0 : index
    %c0_66 = arith.constant 0 : index
    %146 = vector.load %arg16[%c0_64, %c0_65, %c0_66] : memref<2x1x32xf32, #tpu.memory_space<vmem>>, vector<1x1x32xf32>
    %147 = vector.shape_cast %146 : vector<1x1x32xf32> to vector<1x32xf32>
    %c0_67 = arith.constant 0 : index
    %c0_68 = arith.constant 0 : index
    %c0_69 = arith.constant 0 : index
    %148 = vector.load %arg17[%c0_67, %c0_68, %c0_69] : memref<2x1x32xf32, #tpu.memory_space<vmem>>, vector<1x1x32xf32>
    %149 = vector.shape_cast %148 : vector<1x1x32xf32> to vector<1x32xf32>
    %cst_70 = arith.constant dense<0.000000e+00> : vector<16xf32>
    %150 = vector.multi_reduction <add>, %145, %cst_70 [1] : vector<16x32xf32> to vector<16xf32>
    %151 = vector.shape_cast %150 : vector<16xf32> to vector<16x1xf32>
    %cst_71 = arith.constant 3.200000e+01 : f32
    %152 = vector.broadcast %cst_71 : f32 to vector<16x1xf32>
    %153 = arith.divf %151, %152 : vector<16x1xf32>
    %154 = vector.broadcast %153 : vector<16x1xf32> to vector<16x32xf32>
    %155 = arith.subf %145, %154 : vector<16x32xf32>
    %156 = arith.mulf %155, %155 : vector<16x32xf32>
    %cst_72 = arith.constant dense<0.000000e+00> : vector<16xf32>
    %157 = vector.multi_reduction <add>, %156, %cst_72 [1] : vector<16x32xf32> to vector<16xf32>
    %158 = vector.shape_cast %157 : vector<16xf32> to vector<16x1xf32>
    %cst_73 = arith.constant 3.200000e+01 : f32
    %159 = vector.broadcast %cst_73 : f32 to vector<16x1xf32>
    %160 = arith.divf %158, %159 : vector<16x1xf32>
    %161 = vector.broadcast %153 : vector<16x1xf32> to vector<16x32xf32>
    %162 = arith.subf %145, %161 : vector<16x32xf32>
    %cst_74 = arith.constant 9.99999997E-7 : f32
    %163 = vector.broadcast %cst_74 : f32 to vector<16x1xf32>
    %164 = arith.addf %160, %163 : vector<16x1xf32>
    %165 = math.rsqrt %164 : vector<16x1xf32>
    %166 = vector.broadcast %165 : vector<16x1xf32> to vector<16x32xf32>
    %167 = arith.mulf %162, %166 : vector<16x32xf32>
    %168 = vector.broadcast %147 : vector<1x32xf32> to vector<16x32xf32>
    %169 = arith.mulf %167, %168 : vector<16x32xf32>
    %170 = vector.broadcast %149 : vector<1x32xf32> to vector<16x32xf32>
    %171 = arith.addf %169, %170 : vector<16x32xf32>
    %172 = vector.broadcast %1 : vector<16x1xf32> to vector<16x32xf32>
    %173 = arith.mulf %171, %172 : vector<16x32xf32>
    %174 = arith.addf %173, %15 : vector<16x32xf32>
    %175 = arith.truncf %174 : vector<16x32xf32> to vector<16x32xbf16>
    %c1 = arith.constant 1 : index
    %c0_75 = arith.constant 0 : index
    %c0_76 = arith.constant 0 : index
    %176 = vector.load %arg7[%c1, %c0_75, %c0_76] : memref<2x32x96xbf16, #tpu.memory_space<vmem>>, vector<1x32x96xbf16>
    %177 = vector.shape_cast %176 : vector<1x32x96xbf16> to vector<32x96xbf16>
    %cst_77 = arith.constant dense<0.000000e+00> : vector<16x96xf32>
    %178 = tpu.matmul %175, %177, %cst_77 {dimension_numbers = #tpu.dot_dimension_numbers<[1], [0], [0], [1], [0, 0, 1, 1], [], []>} : vector<16x32xbf16>, vector<32x96xbf16>, vector<16x96xf32> -> vector<16x96xf32>
    %179 = vector.shape_cast %178 : vector<16x96xf32> to vector<2x8x96xf32>
    %180 = vector.extract_strided_slice %179 {offsets = [0, 0, 0], sizes = [2, 8, 16], strides = [1, 1, 1]} : vector<2x8x96xf32> to vector<2x8x16xf32>
    %181 = arith.truncf %180 : vector<2x8x16xf32> to vector<2x8x16xbf16>
    %182 = vector.extract_strided_slice %179 {offsets = [0, 0, 32], sizes = [2, 8, 16], strides = [1, 1, 1]} : vector<2x8x96xf32> to vector<2x8x16xf32>
    %183 = arith.truncf %182 : vector<2x8x16xf32> to vector<2x8x16xbf16>
    %184 = vector.extract_strided_slice %179 {offsets = [0, 0, 64], sizes = [2, 8, 16], strides = [1, 1, 1]} : vector<2x8x96xf32> to vector<2x8x16xf32>
    %185 = arith.truncf %184 : vector<2x8x16xf32> to vector<2x8x16xbf16>
    "tpu.trace_start"() <{level = 10 : i32, message = "bik,bjk->bij"}> : () -> ()
    %cst_78 = arith.constant dense<0.000000e+00> : vector<2x8x8xf32>
    %186 = tpu.matmul %181, %183, %cst_78 {dimension_numbers = #tpu.dot_dimension_numbers<[2], [2], [1], [1], [0, 0, 0, 1, 1, 1], [0], [0]>} : vector<2x8x16xbf16>, vector<2x8x16xbf16>, vector<2x8x8xf32> -> vector<2x8x8xf32>
    %cst_79 = arith.constant -1.000000e+09 : f32
    "tpu.trace_stop"() : () -> ()
    %187 = vector.broadcast %cst_79 : f32 to vector<2x8x8xf32>
    %188 = arith.select %25, %187, %186 : vector<2x8x8xi1>, vector<2x8x8xf32>
    %cst_80 = arith.constant dense<0xFF800000> : vector<2x8xf32>
    %189 = vector.multi_reduction <maximumf>, %188, %cst_80 [2] : vector<2x8x8xf32> to vector<2x8xf32>
    %190 = vector.shape_cast %189 : vector<2x8xf32> to vector<2x8x1xf32>
    %191 = vector.broadcast %190 : vector<2x8x1xf32> to vector<2x8x8xf32>
    %192 = arith.subf %188, %191 : vector<2x8x8xf32>
    %193 = math.exp %192 : vector<2x8x8xf32>
    %cst_81 = arith.constant dense<0.000000e+00> : vector<2x8xf32>
    %194 = vector.multi_reduction <add>, %193, %cst_81 [2] : vector<2x8x8xf32> to vector<2x8xf32>
    %195 = vector.shape_cast %194 : vector<2x8xf32> to vector<2x8x1xf32>
    %196 = tpu.reciprocal %195 {approx = true} : vector<2x8x1xf32> -> vector<2x8x1xf32>
    %197 = vector.broadcast %196 : vector<2x8x1xf32> to vector<2x8x8xf32>
    %198 = arith.mulf %193, %197 : vector<2x8x8xf32>
    %199 = arith.truncf %198 : vector<2x8x8xf32> to vector<2x8x8xbf16>
    "tpu.trace_start"() <{level = 10 : i32, message = "bij,bjd->bid"}> : () -> ()
    %cst_82 = arith.constant dense<0.000000e+00> : vector<2x8x16xf32>
    %200 = tpu.matmul %199, %185, %cst_82 {dimension_numbers = #tpu.dot_dimension_numbers<[2], [1], [1], [2], [0, 0, 0, 1, 1, 2], [0], [0]>} : vector<2x8x8xbf16>, vector<2x8x16xbf16>, vector<2x8x16xf32> -> vector<2x8x16xf32>
    "tpu.trace_stop"() : () -> ()
    %201 = arith.truncf %200 : vector<2x8x16xf32> to vector<2x8x16xbf16>
    %202 = vector.extract_strided_slice %179 {offsets = [0, 0, 16], sizes = [2, 8, 16], strides = [1, 1, 1]} : vector<2x8x96xf32> to vector<2x8x16xf32>
    %203 = arith.truncf %202 : vector<2x8x16xf32> to vector<2x8x16xbf16>
    %204 = vector.extract_strided_slice %179 {offsets = [0, 0, 48], sizes = [2, 8, 16], strides = [1, 1, 1]} : vector<2x8x96xf32> to vector<2x8x16xf32>
    %205 = arith.truncf %204 : vector<2x8x16xf32> to vector<2x8x16xbf16>
    %206 = vector.extract_strided_slice %179 {offsets = [0, 0, 80], sizes = [2, 8, 16], strides = [1, 1, 1]} : vector<2x8x96xf32> to vector<2x8x16xf32>
    %207 = arith.truncf %206 : vector<2x8x16xf32> to vector<2x8x16xbf16>
    "tpu.trace_start"() <{level = 10 : i32, message = "bik,bjk->bij"}> : () -> ()
    %cst_83 = arith.constant dense<0.000000e+00> : vector<2x8x8xf32>
    %208 = tpu.matmul %203, %205, %cst_83 {dimension_numbers = #tpu.dot_dimension_numbers<[2], [2], [1], [1], [0, 0, 0, 1, 1, 1], [0], [0]>} : vector<2x8x16xbf16>, vector<2x8x16xbf16>, vector<2x8x8xf32> -> vector<2x8x8xf32>
    %cst_84 = arith.constant -1.000000e+09 : f32
    "tpu.trace_stop"() : () -> ()
    %209 = vector.broadcast %cst_84 : f32 to vector<2x8x8xf32>
    %210 = arith.select %25, %209, %208 : vector<2x8x8xi1>, vector<2x8x8xf32>
    %cst_85 = arith.constant dense<0xFF800000> : vector<2x8xf32>
    %211 = vector.multi_reduction <maximumf>, %210, %cst_85 [2] : vector<2x8x8xf32> to vector<2x8xf32>
    %212 = vector.shape_cast %211 : vector<2x8xf32> to vector<2x8x1xf32>
    %213 = vector.broadcast %212 : vector<2x8x1xf32> to vector<2x8x8xf32>
    %214 = arith.subf %210, %213 : vector<2x8x8xf32>
    %215 = math.exp %214 : vector<2x8x8xf32>
    %cst_86 = arith.constant dense<0.000000e+00> : vector<2x8xf32>
    %216 = vector.multi_reduction <add>, %215, %cst_86 [2] : vector<2x8x8xf32> to vector<2x8xf32>
    %217 = vector.shape_cast %216 : vector<2x8xf32> to vector<2x8x1xf32>
    %218 = tpu.reciprocal %217 {approx = true} : vector<2x8x1xf32> -> vector<2x8x1xf32>
    %219 = vector.broadcast %218 : vector<2x8x1xf32> to vector<2x8x8xf32>
    %220 = arith.mulf %215, %219 : vector<2x8x8xf32>
    %221 = arith.truncf %220 : vector<2x8x8xf32> to vector<2x8x8xbf16>
    "tpu.trace_start"() <{level = 10 : i32, message = "bij,bjd->bid"}> : () -> ()
    %cst_87 = arith.constant dense<0.000000e+00> : vector<2x8x16xf32>
    %222 = tpu.matmul %221, %207, %cst_87 {dimension_numbers = #tpu.dot_dimension_numbers<[2], [1], [1], [2], [0, 0, 0, 1, 1, 2], [0], [0]>} : vector<2x8x8xbf16>, vector<2x8x16xbf16>, vector<2x8x16xf32> -> vector<2x8x16xf32>
    "tpu.trace_stop"() : () -> ()
    %223 = arith.truncf %222 : vector<2x8x16xf32> to vector<2x8x16xbf16>
    %224 = tpu.concatenate %201, %223 in 2 : vector<2x8x16xbf16>, vector<2x8x16xbf16> -> vector<2x8x32xbf16>
    %225 = vector.shape_cast %224 : vector<2x8x32xbf16> to vector<16x32xbf16>
    %c1_88 = arith.constant 1 : index
    %c0_89 = arith.constant 0 : index
    %c0_90 = arith.constant 0 : index
    %226 = vector.load %arg8[%c1_88, %c0_89, %c0_90] : memref<2x32x32xbf16, #tpu.memory_space<vmem>>, vector<1x32x32xbf16>
    %227 = vector.shape_cast %226 : vector<1x32x32xbf16> to vector<32x32xbf16>
    %cst_91 = arith.constant dense<0.000000e+00> : vector<16x32xf32>
    %228 = tpu.matmul %225, %227, %cst_91 {dimension_numbers = #tpu.dot_dimension_numbers<[1], [0], [0], [1], [0, 0, 1, 1], [], []>} : vector<16x32xbf16>, vector<32x32xbf16>, vector<16x32xf32> -> vector<16x32xf32>
    %c1_92 = arith.constant 1 : index
    %c0_93 = arith.constant 0 : index
    %c0_94 = arith.constant 0 : index
    %229 = vector.load %arg9[%c1_92, %c0_93, %c0_94] : memref<2x1x32xf32, #tpu.memory_space<vmem>>, vector<1x1x32xf32>
    %230 = vector.shape_cast %229 : vector<1x1x32xf32> to vector<1x32xf32>
    %231 = vector.broadcast %230 : vector<1x32xf32> to vector<16x32xf32>
    %232 = arith.addf %228, %231 : vector<16x32xf32>
    %233 = arith.addf %232, %174 : vector<16x32xf32>
    %c1_95 = arith.constant 1 : index
    %c0_96 = arith.constant 0 : index
    %c0_97 = arith.constant 0 : index
    %234 = vector.load %arg10[%c1_95, %c0_96, %c0_97] : memref<2x1x32xf32, #tpu.memory_space<vmem>>, vector<1x1x32xf32>
    %235 = vector.shape_cast %234 : vector<1x1x32xf32> to vector<1x32xf32>
    %c1_98 = arith.constant 1 : index
    %c0_99 = arith.constant 0 : index
    %c0_100 = arith.constant 0 : index
    %236 = vector.load %arg11[%c1_98, %c0_99, %c0_100] : memref<2x1x32xf32, #tpu.memory_space<vmem>>, vector<1x1x32xf32>
    %237 = vector.shape_cast %236 : vector<1x1x32xf32> to vector<1x32xf32>
    %cst_101 = arith.constant dense<0.000000e+00> : vector<16xf32>
    %238 = vector.multi_reduction <add>, %233, %cst_101 [1] : vector<16x32xf32> to vector<16xf32>
    %239 = vector.shape_cast %238 : vector<16xf32> to vector<16x1xf32>
    %cst_102 = arith.constant 3.200000e+01 : f32
    %240 = vector.broadcast %cst_102 : f32 to vector<16x1xf32>
    %241 = arith.divf %239, %240 : vector<16x1xf32>
    %242 = vector.broadcast %241 : vector<16x1xf32> to vector<16x32xf32>
    %243 = arith.subf %233, %242 : vector<16x32xf32>
    %244 = arith.mulf %243, %243 : vector<16x32xf32>
    %cst_103 = arith.constant dense<0.000000e+00> : vector<16xf32>
    %245 = vector.multi_reduction <add>, %244, %cst_103 [1] : vector<16x32xf32> to vector<16xf32>
    %246 = vector.shape_cast %245 : vector<16xf32> to vector<16x1xf32>
    %cst_104 = arith.constant 3.200000e+01 : f32
    %247 = vector.broadcast %cst_104 : f32 to vector<16x1xf32>
    %248 = arith.divf %246, %247 : vector<16x1xf32>
    %249 = vector.broadcast %241 : vector<16x1xf32> to vector<16x32xf32>
    %250 = arith.subf %233, %249 : vector<16x32xf32>
    %cst_105 = arith.constant 9.99999997E-7 : f32
    %251 = vector.broadcast %cst_105 : f32 to vector<16x1xf32>
    %252 = arith.addf %248, %251 : vector<16x1xf32>
    %253 = math.rsqrt %252 : vector<16x1xf32>
    %254 = vector.broadcast %253 : vector<16x1xf32> to vector<16x32xf32>
    %255 = arith.mulf %250, %254 : vector<16x32xf32>
    %256 = vector.broadcast %235 : vector<1x32xf32> to vector<16x32xf32>
    %257 = arith.mulf %255, %256 : vector<16x32xf32>
    %258 = vector.broadcast %237 : vector<1x32xf32> to vector<16x32xf32>
    %259 = arith.addf %257, %258 : vector<16x32xf32>
    %260 = vector.broadcast %1 : vector<16x1xf32> to vector<16x32xf32>
    %261 = arith.mulf %259, %260 : vector<16x32xf32>
    %262 = arith.truncf %261 : vector<16x32xf32> to vector<16x32xbf16>
    %c1_106 = arith.constant 1 : index
    %c0_107 = arith.constant 0 : index
    %c0_108 = arith.constant 0 : index
    %263 = vector.load %arg12[%c1_106, %c0_107, %c0_108] : memref<2x32x64xbf16, #tpu.memory_space<vmem>>, vector<1x32x64xbf16>
    %264 = vector.shape_cast %263 : vector<1x32x64xbf16> to vector<32x64xbf16>
    %cst_109 = arith.constant dense<0.000000e+00> : vector<16x64xf32>
    %265 = tpu.matmul %262, %264, %cst_109 {dimension_numbers = #tpu.dot_dimension_numbers<[1], [0], [0], [1], [0, 0, 1, 1], [], []>} : vector<16x32xbf16>, vector<32x64xbf16>, vector<16x64xf32> -> vector<16x64xf32>
    %c1_110 = arith.constant 1 : index
    %c0_111 = arith.constant 0 : index
    %c0_112 = arith.constant 0 : index
    %266 = vector.load %arg13[%c1_110, %c0_111, %c0_112] : memref<2x1x64xf32, #tpu.memory_space<vmem>>, vector<1x1x64xf32>
    %267 = vector.shape_cast %266 : vector<1x1x64xf32> to vector<1x64xf32>
    %268 = vector.broadcast %267 : vector<1x64xf32> to vector<16x64xf32>
    %269 = arith.addf %265, %268 : vector<16x64xf32>
    %cst_113 = arith.constant 5.000000e-01 : f32
    %270 = vector.broadcast %cst_113 : f32 to vector<16x64xf32>
    %271 = arith.mulf %270, %269 : vector<16x64xf32>
    %cst_114 = arith.constant 4.471500e-02 : f32
    %272 = vector.broadcast %cst_114 : f32 to vector<16x64xf32>
    %273 = arith.mulf %272, %269 : vector<16x64xf32>
    %274 = arith.mulf %273, %269 : vector<16x64xf32>
    %275 = arith.mulf %274, %269 : vector<16x64xf32>
    %276 = arith.addf %269, %275 : vector<16x64xf32>
    %cst_115 = arith.constant 0.797884583 : f32
    %277 = vector.broadcast %cst_115 : f32 to vector<16x64xf32>
    %278 = arith.mulf %277, %276 : vector<16x64xf32>
    %279 = math.tanh %278 : vector<16x64xf32>
    %cst_116 = arith.constant 1.000000e+00 : f32
    %280 = vector.broadcast %cst_116 : f32 to vector<16x64xf32>
    %281 = arith.addf %280, %279 : vector<16x64xf32>
    %282 = arith.mulf %271, %281 : vector<16x64xf32>
    %283 = arith.truncf %282 : vector<16x64xf32> to vector<16x64xbf16>
    %c1_117 = arith.constant 1 : index
    %c0_118 = arith.constant 0 : index
    %c0_119 = arith.constant 0 : index
    %284 = vector.load %arg14[%c1_117, %c0_118, %c0_119] : memref<2x64x32xbf16, #tpu.memory_space<vmem>>, vector<1x64x32xbf16>
    %285 = vector.shape_cast %284 : vector<1x64x32xbf16> to vector<64x32xbf16>
    %cst_120 = arith.constant dense<0.000000e+00> : vector<16x32xf32>
    %286 = tpu.matmul %283, %285, %cst_120 {dimension_numbers = #tpu.dot_dimension_numbers<[1], [0], [0], [1], [0, 0, 1, 1], [], []>} : vector<16x64xbf16>, vector<64x32xbf16>, vector<16x32xf32> -> vector<16x32xf32>
    %c1_121 = arith.constant 1 : index
    %c0_122 = arith.constant 0 : index
    %c0_123 = arith.constant 0 : index
    %287 = vector.load %arg15[%c1_121, %c0_122, %c0_123] : memref<2x1x32xf32, #tpu.memory_space<vmem>>, vector<1x1x32xf32>
    %288 = vector.shape_cast %287 : vector<1x1x32xf32> to vector<1x32xf32>
    %289 = vector.broadcast %288 : vector<1x32xf32> to vector<16x32xf32>
    %290 = arith.addf %286, %289 : vector<16x32xf32>
    %291 = arith.addf %290, %261 : vector<16x32xf32>
    %c1_124 = arith.constant 1 : index
    %c0_125 = arith.constant 0 : index
    %c0_126 = arith.constant 0 : index
    %292 = vector.load %arg16[%c1_124, %c0_125, %c0_126] : memref<2x1x32xf32, #tpu.memory_space<vmem>>, vector<1x1x32xf32>
    %293 = vector.shape_cast %292 : vector<1x1x32xf32> to vector<1x32xf32>
    %c1_127 = arith.constant 1 : index
    %c0_128 = arith.constant 0 : index
    %c0_129 = arith.constant 0 : index
    %294 = vector.load %arg17[%c1_127, %c0_128, %c0_129] : memref<2x1x32xf32, #tpu.memory_space<vmem>>, vector<1x1x32xf32>
    %295 = vector.shape_cast %294 : vector<1x1x32xf32> to vector<1x32xf32>
    %cst_130 = arith.constant dense<0.000000e+00> : vector<16xf32>
    %296 = vector.multi_reduction <add>, %291, %cst_130 [1] : vector<16x32xf32> to vector<16xf32>
    %297 = vector.shape_cast %296 : vector<16xf32> to vector<16x1xf32>
    %cst_131 = arith.constant 3.200000e+01 : f32
    %298 = vector.broadcast %cst_131 : f32 to vector<16x1xf32>
    %299 = arith.divf %297, %298 : vector<16x1xf32>
    %300 = vector.broadcast %299 : vector<16x1xf32> to vector<16x32xf32>
    %301 = arith.subf %291, %300 : vector<16x32xf32>
    %302 = arith.mulf %301, %301 : vector<16x32xf32>
    %cst_132 = arith.constant dense<0.000000e+00> : vector<16xf32>
    %303 = vector.multi_reduction <add>, %302, %cst_132 [1] : vector<16x32xf32> to vector<16xf32>
    %304 = vector.shape_cast %303 : vector<16xf32> to vector<16x1xf32>
    %cst_133 = arith.constant 3.200000e+01 : f32
    %305 = vector.broadcast %cst_133 : f32 to vector<16x1xf32>
    %306 = arith.divf %304, %305 : vector<16x1xf32>
    %307 = vector.broadcast %299 : vector<16x1xf32> to vector<16x32xf32>
    %308 = arith.subf %291, %307 : vector<16x32xf32>
    %cst_134 = arith.constant 9.99999997E-7 : f32
    %309 = vector.broadcast %cst_134 : f32 to vector<16x1xf32>
    %310 = arith.addf %306, %309 : vector<16x1xf32>
    %311 = math.rsqrt %310 : vector<16x1xf32>
    %312 = vector.broadcast %311 : vector<16x1xf32> to vector<16x32xf32>
    %313 = arith.mulf %308, %312 : vector<16x32xf32>
    %314 = vector.broadcast %293 : vector<1x32xf32> to vector<16x32xf32>
    %315 = arith.mulf %313, %314 : vector<16x32xf32>
    %316 = vector.broadcast %295 : vector<1x32xf32> to vector<16x32xf32>
    %317 = arith.addf %315, %316 : vector<16x32xf32>
    %318 = vector.broadcast %1 : vector<16x1xf32> to vector<16x32xf32>
    %319 = arith.mulf %317, %318 : vector<16x32xf32>
    %320 = vector.shape_cast %319 : vector<16x32xf32> to vector<2x8x32xf32>
    %c0_135 = arith.constant 0 : index
    %c0_136 = arith.constant 0 : index
    %c0_137 = arith.constant 0 : index
    %321 = vector.load %arg18[%c0_135, %c0_136, %c0_137] : memref<2x8x32xf32, #tpu.memory_space<vmem>>, vector<2x8x32xf32>
    tpu.vector_store %arg18[%c0_135, %c0_136, %c0_137], %320 {strides = array<i32>} : memref<2x8x32xf32, #tpu.memory_space<vmem>>, vector<2x8x32xf32>,
    return
  }
  func.func @transform_0(%arg0: i32) -> (i32, i32, i32) {
    %c0_i32 = arith.constant 0 : i32
    %c0_i32_0 = arith.constant 0 : i32
    %c0_i32_1 = arith.constant 0 : i32
    return %arg0, %c0_i32, %c0_i32_0 : i32, i32, i32
  }
  func.func @transform_1(%arg0: i32) -> (i32, i32, i32) {
    %c0_i32 = arith.constant 0 : i32
    %c0_i32_0 = arith.constant 0 : i32
    %c0_i32_1 = arith.constant 0 : i32
    return %arg0, %c0_i32, %c0_i32_0 : i32, i32, i32
  }
  func.func @transform_2(%arg0: i32) -> (i32, i32, i32) {
    %c0_i32 = arith.constant 0 : i32
    %c0_i32_0 = arith.constant 0 : i32
    %c0_i32_1 = arith.constant 0 : i32
    return %arg0, %c0_i32, %c0_i32_0 : i32, i32, i32
  }
  func.func @transform_3(%arg0: i32) -> (i32, i32, i32) {
    %c0_i32 = arith.constant 0 : i32
    %c0_i32_0 = arith.constant 0 : i32
    %c0_i32_1 = arith.constant 0 : i32
    return %arg0, %c0_i32, %c0_i32_0 : i32, i32, i32
  }
  func.func @transform_4(%arg0: i32) -> (i32, i32) {
    %c0_i32 = arith.constant 0 : i32
    %c0_i32_0 = arith.constant 0 : i32
    %c0_i32_1 = arith.constant 0 : i32
    return %c0_i32, %c0_i32_0 : i32, i32
  }
  func.func @transform_5(%arg0: i32) -> (i32, i32) {
    %c0_i32 = arith.constant 0 : i32
    %c0_i32_0 = arith.constant 0 : i32
    %c0_i32_1 = arith.constant 0 : i32
    return %c0_i32, %c0_i32_0 : i32, i32
  }
  func.func @transform_6(%arg0: i32) -> (i32, i32, i32) {
    %c0_i32 = arith.constant 0 : i32
    %c0_i32_0 = arith.constant 0 : i32
    %c0_i32_1 = arith.constant 0 : i32
    %c0_i32_2 = arith.constant 0 : i32
    return %c0_i32, %c0_i32_0, %c0_i32_1 : i32, i32, i32
  }
  func.func @transform_7(%arg0: i32) -> (i32, i32, i32) {
    %c0_i32 = arith.constant 0 : i32
    %c0_i32_0 = arith.constant 0 : i32
    %c0_i32_1 = arith.constant 0 : i32
    %c0_i32_2 = arith.constant 0 : i32
    return %c0_i32, %c0_i32_0, %c0_i32_1 : i32, i32, i32
  }
  func.func @transform_8(%arg0: i32) -> (i32, i32, i32) {
    %c0_i32 = arith.constant 0 : i32
    %c0_i32_0 = arith.constant 0 : i32
    %c0_i32_1 = arith.constant 0 : i32
    %c0_i32_2 = arith.constant 0 : i32
    return %c0_i32, %c0_i32_0, %c0_i32_1 : i32, i32, i32
  }
  func.func @transform_9(%arg0: i32) -> (i32, i32, i32) {
    %c0_i32 = arith.constant 0 : i32
    %c0_i32_0 = arith.constant 0 : i32
    %c0_i32_1 = arith.constant 0 : i32
    %c0_i32_2 = arith.constant 0 : i32
    return %c0_i32, %c0_i32_0, %c0_i32_1 : i32, i32, i32
  }
  func.func @transform_10(%arg0: i32) -> (i32, i32, i32) {
    %c0_i32 = arith.constant 0 : i32
    %c0_i32_0 = arith.constant 0 : i32
    %c0_i32_1 = arith.constant 0 : i32
    %c0_i32_2 = arith.constant 0 : i32
    return %c0_i32, %c0_i32_0, %c0_i32_1 : i32, i32, i32
  }
  func.func @transform_11(%arg0: i32) -> (i32, i32, i32) {
    %c0_i32 = arith.constant 0 : i32
    %c0_i32_0 = arith.constant 0 : i32
    %c0_i32_1 = arith.constant 0 : i32
    %c0_i32_2 = arith.constant 0 : i32
    return %c0_i32, %c0_i32_0, %c0_i32_1 : i32, i32, i32
  }
  func.func @transform_12(%arg0: i32) -> (i32, i32, i32) {
    %c0_i32 = arith.constant 0 : i32
    %c0_i32_0 = arith.constant 0 : i32
    %c0_i32_1 = arith.constant 0 : i32
    %c0_i32_2 = arith.constant 0 : i32
    return %c0_i32, %c0_i32_0, %c0_i32_1 : i32, i32, i32
  }
  func.func @transform_13(%arg0: i32) -> (i32, i32, i32) {
    %c0_i32 = arith.constant 0 : i32
    %c0_i32_0 = arith.constant 0 : i32
    %c0_i32_1 = arith.constant 0 : i32
    %c0_i32_2 = arith.constant 0 : i32
    return %c0_i32, %c0_i32_0, %c0_i32_1 : i32, i32, i32
  }
  func.func @transform_14(%arg0: i32) -> (i32, i32, i32) {
    %c0_i32 = arith.constant 0 : i32
    %c0_i32_0 = arith.constant 0 : i32
    %c0_i32_1 = arith.constant 0 : i32
    %c0_i32_2 = arith.constant 0 : i32
    return %c0_i32, %c0_i32_0, %c0_i32_1 : i32, i32, i32
  }
  func.func @transform_15(%arg0: i32) -> (i32, i32, i32) {
    %c0_i32 = arith.constant 0 : i32
    %c0_i32_0 = arith.constant 0 : i32
    %c0_i32_1 = arith.constant 0 : i32
    %c0_i32_2 = arith.constant 0 : i32
    return %c0_i32, %c0_i32_0, %c0_i32_1 : i32, i32, i32
  }
  func.func @transform_16(%arg0: i32) -> (i32, i32, i32) {
    %c0_i32 = arith.constant 0 : i32
    %c0_i32_0 = arith.constant 0 : i32
    %c0_i32_1 = arith.constant 0 : i32
    %c0_i32_2 = arith.constant 0 : i32
    return %c0_i32, %c0_i32_0, %c0_i32_1 : i32, i32, i32
  }
  func.func @transform_17(%arg0: i32) -> (i32, i32, i32) {
    %c0_i32 = arith.constant 0 : i32
    %c0_i32_0 = arith.constant 0 : i32
    %c0_i32_1 = arith.constant 0 : i32
    return %arg0, %c0_i32, %c0_i32_0 : i32, i32, i32
  }
}

</mosaic_0001>

<llo_original>
// kernel: tpu_custom_call.1
$region0: #{tpu_custom_call.1}
  #allocation0 [shape = 'u32[]', space=smem, size = 0x4, offset = 0x4, fixed_abs, tag = 'smem constant byte address 0x4 - core index']
  #allocation1 [shape = 'u32[72,128]{1,0:T(1,128)}', space=vmem, size = 0x9000, scoped, tag = 'internal scratch']
  %s0 = inlined_call_operand.vmem [shape: f32[2,8,32], index: 0, kind: input, shape index: {}]
  %s1 = inlined_call_operand.vmem [shape: f32[2,8,1], index: 1, kind: input, shape index: {}]
  %s2 = inlined_call_operand.vmem [shape: f32[2,8,1], index: 2, kind: input, shape index: {}]
  %s3 = inlined_call_operand.hbm [shape: s32[2,1,8], index: 3, kind: input, shape index: {}]
  %s4 = inlined_call_operand.hbm [shape: f32[1,32], index: 4, kind: input, shape index: {}]
  %s5 = inlined_call_operand.hbm [shape: f32[1,32], index: 5, kind: input, shape index: {}]
  %s6 = inlined_call_operand.vmem [shape: bf16[2,32,96], index: 6, kind: input, shape index: {}]
  %s7 = inlined_call_operand.vmem [shape: bf16[2,32,32], index: 7, kind: input, shape index: {}]
  %s8 = inlined_call_operand.hbm [shape: f32[2,1,32], index: 8, kind: input, shape index: {}]
  %s9 = inlined_call_operand.hbm [shape: f32[2,1,32], index: 9, kind: input, shape index: {}]
  %s10 = inlined_call_operand.hbm [shape: f32[2,1,32], index: 10, kind: input, shape index: {}]
  %s11 = inlined_call_operand.vmem [shape: bf16[2,32,64], index: 11, kind: input, shape index: {}]
  %s12 = inlined_call_operand.hbm [shape: f32[2,1,64], index: 12, kind: input, shape index: {}]
  %s13 = inlined_call_operand.vmem [shape: bf16[2,64,32], index: 13, kind: input, shape index: {}]
  %s14 = inlined_call_operand.hbm [shape: f32[2,1,32], index: 14, kind: input, shape index: {}]
  %s15 = inlined_call_operand.hbm [shape: f32[2,1,32], index: 15, kind: input, shape index: {}]
  %s16 = inlined_call_operand.vmem [shape: f32[2,1,32], index: 16, kind: input, shape index: {}]
  %s17 = inlined_call_operand.hbm [shape: f32[2,8,32], index: 17, kind: output, shape index: {}]
  %s18 = sld [smem:[#allocation0]]
  $region114: #{tpu_custom_call.1} parent=0
    _
  %s20 = ssub.s32 1, %s18
  %s21 = scalar_select 0, %s20, %s18
  $region1: #{tpu_custom_call.1} parent=0
    #allocation2 [shape = 'u8[1024]{0}', space=vmem, size = 0x400, scoped, tag = 'input window, operand 3, single buffered']
    #allocation3 [shape = 's32[1]{0}', space=sflag, size = 0x4, scoped, tag = 'scoped memory for tpu_custom_call.1']
    #allocation4 [shape = 's32[1]{0}', space=sflag, size = 0x4, scoped, tag = 'scoped memory for tpu_custom_call.1']
    #allocation5 [shape = 'u8[512]{0}', space=vmem, size = 0x400, scoped, tag = 'input window, operand 4, single buffered']
    #allocation6 [shape = 's32[1]{0}', space=sflag, size = 0x4, scoped, tag = 'scoped memory for tpu_custom_call.1']
    #allocation7 [shape = 'u8[512]{0}', space=vmem, size = 0x400, scoped, tag = 'input window, operand 5, single buffered']
    #allocation8 [shape = 'u8[1024]{0}', space=vmem, size = 0x400, scoped, tag = 'input window, operand 8, single buffered']
    #allocation9 [shape = 's32[1]{0}', space=sflag, size = 0x4, scoped, tag = 'scoped memory for tpu_custom_call.1']
    #allocation10 [shape = 'u8[1024]{0}', space=vmem, size = 0x400, scoped, tag = 'input window, operand 9, single buffered']
    #allocation11 [shape = 'u8[1024]{0}', space=vmem, size = 0x400, scoped, tag = 'input window, operand 10, single buffered']
    #allocation12 [shape = 's32[1]{0}', space=sflag, size = 0x4, scoped, tag = 'scoped memory for tpu_custom_call.1']
    #allocation13 [shape = 'u8[1024]{0}', space=vmem, size = 0x400, scoped, tag = 'input window, operand 12, single buffered']
    #allocation14 [shape = 'u8[1024]{0}', space=vmem, size = 0x400, scoped, tag = 'input window, operand 14, single buffered']
    #allocation15 [shape = 's32[1]{0}', space=sflag, size = 0x4, scoped, tag = 'scoped memory for tpu_custom_call.1']
    #allocation16 [shape = 'u8[1024]{0}', space=vmem, size = 0x400, scoped, tag = 'input window, operand 15, single buffered']
    #allocation17 [shape = 'u8[8192]{0}', space=vmem, size = 0x2000, scoped, tag = 'output window, operand 0, single buffered']
    %22 = vsyncpa [#allocation3], 0
    %23 = vsyncpa [#allocation6], 0
    %24 = vsyncpa [#allocation9], 0
    %25 = vsyncpa [#allocation12], 0
    %26 = vsyncpa [#allocation15], 0
    %27 = vsyncpa [#allocation4], 0
    // Predicated region
    $region2: #{tpu_custom_call.1} parent=1 // pred_check
      _
    $region3: #{tpu_custom_call.1} parent=1 // pred_check_branch
      %29 = sbr.rel (0) target = $region5
    $region4: #{tpu_custom_call.1} parent=1 // pred_region
      _
    $region5: #{tpu_custom_call.1} parent=1 // pred_fallthru
      _
    // Predicated region
    $region6: #{tpu_custom_call.1} parent=1 // pred_check
      _
    $region7: #{tpu_custom_call.1} parent=1 // pred_check_branch
      %31 = sbr.rel (0) target = $region9
    $region8: #{tpu_custom_call.1} parent=1 // pred_region
      _
    $region9: #{tpu_custom_call.1} parent=1 // pred_fallthru
      _
    // Predicated region
    $region10: #{tpu_custom_call.1} parent=1 // pred_check
      _
    $region11: #{tpu_custom_call.1} parent=1 // pred_check_branch
      %33 = sbr.rel (0) target = $region13
    $region12: #{tpu_custom_call.1} parent=1 // pred_region
      _
    $region13: #{tpu_custom_call.1} parent=1 // pred_fallthru
      _
    // Predicated region
    $region14: #{tpu_custom_call.1} parent=1 // pred_check
      _
    $region15: #{tpu_custom_call.1} parent=1 // pred_check_branch
      %35 = sbr.rel (0) target = $region17
    $region16: #{tpu_custom_call.1} parent=1 // pred_region
      %37 = vsyncadd [#allocation3], 0
      %s38 = sshll.u32 %s3, 4
      %s39 = int_to_ptr.hbm [resolvable:$true] %s38
      %s40 = sshll.u32 [#allocation2], 4
      %s41 = int_to_ptr.vmem [resolvable:$true] %s40
      %46 = dma.hbm_to_vmem [thread:$0]  %s39, 32, %s41, [#allocation3], 16, 16, 1
    $region17: #{tpu_custom_call.1} parent=1 // pred_fallthru
      _
    // Predicated region
    $region18: #{tpu_custom_call.1} parent=1 // pred_check
      _
    $region19: #{tpu_custom_call.1} parent=1 // pred_check_branch
      %48 = sbr.rel (0) target = $region21
    $region20: #{tpu_custom_call.1} parent=1 // pred_region
      %50 = vsyncadd [#allocation6], 0
      %s52 = sshll.u32 %s4, 4
      %s53 = int_to_ptr.hbm [resolvable:$true] %s52
      %s54 = sshll.u32 [#allocation5], 4
      %s55 = int_to_ptr.vmem [resolvable:$true] %s54
      %57 = dma.hbm_to_vmem [thread:$0]  %s53, 16, %s55, [#allocation6]
    $region21: #{tpu_custom_call.1} parent=1 // pred_fallthru
      _
    // Predicated region
    $region22: #{tpu_custom_call.1} parent=1 // pred_check
      _
    $region23: #{tpu_custom_call.1} parent=1 // pred_check_branch
      %59 = sbr.rel (0) target = $region25
    $region24: #{tpu_custom_call.1} parent=1 // pred_region
      %61 = vsyncadd [#allocation6], 0
      %s63 = sshll.u32 %s5, 4
      %s64 = int_to_ptr.hbm [resolvable:$true] %s63
      %s65 = sshll.u32 [#allocation7], 4
      %s66 = int_to_ptr.vmem [resolvable:$true] %s65
      %68 = dma.hbm_to_vmem [thread:$0]  %s64, 16, %s66, [#allocation6]
    $region25: #{tpu_custom_call.1} parent=1 // pred_fallthru
      _
    // Predicated region
    $region26: #{tpu_custom_call.1} parent=1 // pred_check
      _
    $region27: #{tpu_custom_call.1} parent=1 // pred_check_branch
      %70 = sbr.rel (0) target = $region29
    $region28: #{tpu_custom_call.1} parent=1 // pred_region
      _
    $region29: #{tpu_custom_call.1} parent=1 // pred_fallthru
      _
    // Predicated region
    $region30: #{tpu_custom_call.1} parent=1 // pred_check
      _
    $region31: #{tpu_custom_call.1} parent=1 // pred_check_branch
      %72 = sbr.rel (0) target = $region33
    $region32: #{tpu_custom_call.1} parent=1 // pred_region
      _
    $region33: #{tpu_custom_call.1} parent=1 // pred_fallthru
      _
    // Predicated region
    $region34: #{tpu_custom_call.1} parent=1 // pred_check
      _
    $region35: #{tpu_custom_call.1} parent=1 // pred_check_branch
      %74 = sbr.rel (0) target = $region37
    $region36: #{tpu_custom_call.1} parent=1 // pred_region
      %76 = vsyncadd [#allocation9], 0
      %s77 = sshll.u32 %s8, 4
      %s78 = int_to_ptr.hbm [resolvable:$true] %s77
      %s79 = sshll.u32 [#allocation8], 4
      %s80 = int_to_ptr.vmem [resolvable:$true] %s79
      %85 = dma.hbm_to_vmem [thread:$0]  %s78, 32, %s80, [#allocation9], 16, 16, 1
    $region37: #{tpu_custom_call.1} parent=1 // pred_fallthru
      _
    // Predicated region
    $region38: #{tpu_custom_call.1} parent=1 // pred_check
      _
    $region39: #{tpu_custom_call.1} parent=1 // pred_check_branch
      %87 = sbr.rel (0) target = $region41
    $region40: #{tpu_custom_call.1} parent=1 // pred_region
      %89 = vsyncadd [#allocation9], 0
      %s90 = sshll.u32 %s9, 4
      %s91 = int_to_ptr.hbm [resolvable:$true] %s90
      %s92 = sshll.u32 [#allocation10], 4
      %s93 = int_to_ptr.vmem [resolvable:$true] %s92
      %98 = dma.hbm_to_vmem [thread:$0]  %s91, 32, %s93, [#allocation9], 16, 16, 1
    $region41: #{tpu_custom_call.1} parent=1 // pred_fallthru
      _
    // Predicated region
    $region42: #{tpu_custom_call.1} parent=1 // pred_check
      _
    $region43: #{tpu_custom_call.1} parent=1 // pred_check_branch
      %100 = sbr.rel (0) target = $region45
    $region44: #{tpu_custom_call.1} parent=1 // pred_region
      %102 = vsyncadd [#allocation12], 0
      %s103 = sshll.u32 %s10, 4
      %s104 = int_to_ptr.hbm [resolvable:$true] %s103
      %s105 = sshll.u32 [#allocation11], 4
      %s106 = int_to_ptr.vmem [resolvable:$true] %s105
      %111 = dma.hbm_to_vmem [thread:$0]  %s104, 32, %s106, [#allocation12], 16, 16, 1
    $region45: #{tpu_custom_call.1} parent=1 // pred_fallthru
      _
    // Predicated region
    $region46: #{tpu_custom_call.1} parent=1 // pred_check
      _
    $region47: #{tpu_custom_call.1} parent=1 // pred_check_branch
      %113 = sbr.rel (0) target = $region49
    $region48: #{tpu_custom_call.1} parent=1 // pred_region
      _
    $region49: #{tpu_custom_call.1} parent=1 // pred_fallthru
      _
    // Predicated region
    $region50: #{tpu_custom_call.1} parent=1 // pred_check
      _
    $region51: #{tpu_custom_call.1} parent=1 // pred_check_branch
      %115 = sbr.rel (0) target = $region53
    $region52: #{tpu_custom_call.1} parent=1 // pred_region
      %117 = vsyncadd [#allocation12], 0
      %s118 = sshll.u32 %s12, 4
      %s119 = int_to_ptr.hbm [resolvable:$true] %s118
      %s120 = sshll.u32 [#allocation13], 4
      %s121 = int_to_ptr.vmem [resolvable:$true] %s120
      %126 = dma.hbm_to_vmem [thread:$0]  %s119, 32, %s121, [#allocation12], 16, 16, 1
    $region53: #{tpu_custom_call.1} parent=1 // pred_fallthru
      _
    // Predicated region
    $region54: #{tpu_custom_call.1} parent=1 // pred_check
      _
    $region55: #{tpu_custom_call.1} parent=1 // pred_check_branch
      %128 = sbr.rel (0) target = $region57
    $region56: #{tpu_custom_call.1} parent=1 // pred_region
      _
    $region57: #{tpu_custom_call.1} parent=1 // pred_fallthru
      _
    // Predicated region
    $region58: #{tpu_custom_call.1} parent=1 // pred_check
      _
    $region59: #{tpu_custom_call.1} parent=1 // pred_check_branch
      %130 = sbr.rel (0) target = $region61
    $region60: #{tpu_custom_call.1} parent=1 // pred_region
      %132 = vsyncadd [#allocation15], 0
      %s133 = sshll.u32 %s14, 4
      %s134 = int_to_ptr.hbm [resolvable:$true] %s133
      %s135 = sshll.u32 [#allocation14], 4
      %s136 = int_to_ptr.vmem [resolvable:$true] %s135
      %141 = dma.hbm_to_vmem [thread:$0]  %s134, 32, %s136, [#allocation15], 16, 16, 1
    $region61: #{tpu_custom_call.1} parent=1 // pred_fallthru
      _
    // Predicated region
    $region62: #{tpu_custom_call.1} parent=1 // pred_check
      _
    $region63: #{tpu_custom_call.1} parent=1 // pred_check_branch
      %143 = sbr.rel (0) target = $region65
    $region64: #{tpu_custom_call.1} parent=1 // pred_region
      %145 = vsyncadd [#allocation15], 0
      %s146 = sshll.u32 %s15, 4
      %s147 = int_to_ptr.hbm [resolvable:$true] %s146
      %s148 = sshll.u32 [#allocation16], 4
      %s149 = int_to_ptr.vmem [resolvable:$true] %s148
      %154 = dma.hbm_to_vmem [thread:$0]  %s147, 32, %s149, [#allocation15], 16, 16, 1
    $region65: #{tpu_custom_call.1} parent=1 // pred_fallthru
      _
    // Predicated region
    $region66: #{tpu_custom_call.1} parent=1 // pred_check
      _
    $region67: #{tpu_custom_call.1} parent=1 // pred_check_branch
      %156 = sbr.rel (0) target = $region69
    $region68: #{tpu_custom_call.1} parent=1 // pred_region
      _
    $region69: #{tpu_custom_call.1} parent=1 // pred_fallthru
      _
    // Predicated region
    $region70: #{tpu_custom_call.1} parent=1 // pred_check
      _
    $region71: #{tpu_custom_call.1} parent=1 // pred_check_branch
      %158 = sbr.rel (0) target = $region73
    $region72: #{tpu_custom_call.1} parent=1 // pred_region
      %160 = dma.done [#allocation3], 32
    $region73: #{tpu_custom_call.1} parent=1 // pred_fallthru
      _
    // Predicated region
    $region74: #{tpu_custom_call.1} parent=1 // pred_check
      _
    $region75: #{tpu_custom_call.1} parent=1 // pred_check_branch
      %162 = sbr.rel (0) target = $region77
    $region76: #{tpu_custom_call.1} parent=1 // pred_region
      %164 = dma.done [#allocation6], 16
    $region77: #{tpu_custom_call.1} parent=1 // pred_fallthru
      _
    // Predicated region
    $region78: #{tpu_custom_call.1} parent=1 // pred_check
      _
    $region79: #{tpu_custom_call.1} parent=1 // pred_check_branch
      %166 = sbr.rel (0) target = $region81
    $region80: #{tpu_custom_call.1} parent=1 // pred_region
      %168 = dma.done [#allocation6], 16
    $region81: #{tpu_custom_call.1} parent=1 // pred_fallthru
      _
    // Predicated region
    $region82: #{tpu_custom_call.1} parent=1 // pred_check
      _
    $region83: #{tpu_custom_call.1} parent=1 // pred_check_branch
      %170 = sbr.rel (0) target = $region85
    $region84: #{tpu_custom_call.1} parent=1 // pred_region
      %172 = dma.done [#allocation9], 32
    $region85: #{tpu_custom_call.1} parent=1 // pred_fallthru
      _
    // Predicated region
    $region86: #{tpu_custom_call.1} parent=1 // pred_check
      _
    $region87: #{tpu_custom_call.1} parent=1 // pred_check_branch
      %174 = sbr.rel (0) target = $region89
    $region88: #{tpu_custom_call.1} parent=1 // pred_region
      %176 = dma.done [#allocation9], 32
    $region89: #{tpu_custom_call.1} parent=1 // pred_fallthru
      _
    // Predicated region
    $region90: #{tpu_custom_call.1} parent=1 // pred_check
      _
    $region91: #{tpu_custom_call.1} parent=1 // pred_check_branch
      %178 = sbr.rel (0) target = $region93
    $region92: #{tpu_custom_call.1} parent=1 // pred_region
      %180 = dma.done [#allocation12], 32
    $region93: #{tpu_custom_call.1} parent=1 // pred_fallthru
      _
    // Predicated region
    $region94: #{tpu_custom_call.1} parent=1 // pred_check
      _
    $region95: #{tpu_custom_call.1} parent=1 // pred_check_branch
      %182 = sbr.rel (0) target = $region97
    $region96: #{tpu_custom_call.1} parent=1 // pred_region
      %184 = dma.done [#allocation12], 32
    $region97: #{tpu_custom_call.1} parent=1 // pred_fallthru
      _
    // Predicated region
    $region98: #{tpu_custom_call.1} parent=1 // pred_check
      _
    $region99: #{tpu_custom_call.1} parent=1 // pred_check_branch
      %186 = sbr.rel (0) target = $region101
    $region100: #{tpu_custom_call.1} parent=1 // pred_region
      %188 = dma.done [#allocation15], 32
    $region101: #{tpu_custom_call.1} parent=1 // pred_fallthru
      _
    // Predicated region
    $region102: #{tpu_custom_call.1} parent=1 // pred_check
      _
    $region103: #{tpu_custom_call.1} parent=1 // pred_check_branch
      %190 = sbr.rel (0) target = $region105
    $region104: #{tpu_custom_call.1} parent=1 // pred_region
      %192 = dma.done [#allocation15], 32
    $region105: #{tpu_custom_call.1} parent=1 // pred_fallthru
      _
    %v194 = vld [vmem:[%s2] sm:$0xff]
    %v195 = vld [vmem:[%s2 + $0x8] sm:$0xff]
    %v196 = vld [vmem:[%s1] sm:$0xff]
    %v197 = vld [vmem:[%s1 + $0x8] sm:$0xff]
    %v198 = vld [vmem:[#allocation5] sm:$0x1]
    %200 = vset.pattern.permute.xlu0 0
    %201 = vperm.xlu0 %200, %v196
    %v202 = vpop.permute.xlu0 %201
    %205 = vset.pattern.permute.xlu0 0
    %206 = vperm.xlu0 %205, %v197
    %v207 = vpop.permute.xlu0 %206
    %v210 = vperm.slane %v198, 0
    %v212 = vmul.f32 %v202, %v210
    %v213 = vmul.f32 %v207, %v210
    %v214 = vld [vmem:[#allocation7] sm:$0x1]
    %v216 = vperm.slane %v214, 0
    %v218 = vadd.f32 %v212, %v216
    %v219 = vadd.f32 %v213, %v216
    %v220 = vand.u32 2147483647, %v218
    %vm221 = vcmp.le.f32.partialorder %v220, 0.7853982
    %vm222 = vcmp.lt.s32.totalorder %v218, 0
    %v223 = vand.u32 %v218, 2139095040
    %v224 = vshrl.u32 %v223, 23
    %v225 = vsub.s32 %v224, 127
    %v226 = vand.u32 2147483647, %v218
    %v227 = vand.u32 %v226, 8388607
    %v228 = vor.u32 %v227, 8388608
    %v229 = vsub.s32 0, %v228
    %v230 = vadd.s32 %v225, 1
    %vm231 = vcmp.gt.s32.totalorder %v230, 0
    %v232 = vsel %vm231, %v230, 0
    %v233 = vshrl.u32 %v232, 5
    %v234 = vand.u32 %v232, 31
    %v235 = vsub.s32 32, %v234
    %v236 = vshrl.u32 683565275, %v235
    %v237 = vshll.u32 683565275, %v234
    %v238 = vshrl.u32 2475754826, %v235
    %v239 = vor.u32 %v237, %v238
    %v240 = vshll.u32 2475754826, %v234
    %v241 = vshrl.u32 2131351028, %v235
    %v242 = vor.u32 %v240, %v241
    %v243 = vshll.u32 2131351028, %v234
    %v244 = vshrl.u32 2102212464, %v235
    %v245 = vor.u32 %v243, %v244
    %v246 = vshll.u32 2102212464, %v234
    %v247 = vshrl.u32 920167782, %v235
    %v248 = vor.u32 %v246, %v247
    %v249 = vshll.u32 920167782, %v234
    %v250 = vshrl.u32 1326507024, %v235
    %v251 = vor.u32 %v249, %v250
    %vm252 = vcmp.lt.s32.totalorder %v233, 1
    %vm253 = vcmp.lt.s32.totalorder %v233, 2
    %vm254 = vcmp.lt.s32.totalorder %v233, 3
    %vm255 = vcmp.lt.s32.totalorder %v233, 4
    %v256 = vsel %vm252, %v236, %v239
    %v257 = vsel %vm255, %v245, 2102212464
    %v258 = vsel %vm254, %v242, %v257
    %v259 = vsel %vm253, %v256, %v258
    %v260 = vsel %vm252, %v239, %v242
    %v261 = vsel %vm255, %v248, 920167782
    %v262 = vsel %vm254, %v245, %v261
    %v263 = vsel %vm253, %v260, %v262
    %v264 = vsel %vm252, %v242, %v245
    %v265 = vsel %vm255, %v251, 1326507024
    %v266 = vsel %vm254, %v248, %v265
    %v267 = vsel %vm253, %v264, %v266
    %v268 = vshll.u32 %v228, 8
    %v269 = vand.u32 %v268, 65535
    %v270 = vshrl.u32 %v268, 16
    %v271 = vand.u32 %v267, 65535
    %v272 = vshrl.u32 %v267, 16
    %v273 = vmul.u32 %v269, %v271
    %v274 = vmul.u32 %v269, %v272
    %v275 = vmul.u32 %v270, %v271
    %v276 = vmul.u32 %v270, %v272
    %v277 = vshll.u32 %v274, 16
    %v278 = vshrl.u32 %v274, 16
    %v279 = vshll.u32 %v275, 16
    %v280 = vshrl.u32 %v275, 16
    %vm281 = vc.u32 %v273, %v277
    %v282 = vsel %vm281, 1, 0
    %v283 = vadd.s32 %v273, %v277
    %v284 = vadd.s32 %v276, %v282
    %vm285 = vc.u32 %v283, %v279
    %v286 = vsel %vm285, 1, 0
    %v287 = vadd.s32 %v283, %v279
    %v288 = vadd.s32 %v284, %v286
    %v289 = vadd.s32 %v288, %v278
    %v290 = vadd.s32 %v289, %v280
    %v291 = vand.u32 %v268, 65535
    %v292 = vshrl.u32 %v268, 16
    %v293 = vand.u32 %v263, 65535
    %v294 = vshrl.u32 %v263, 16
    %v295 = vmul.u32 %v291, %v293
    %v296 = vmul.u32 %v291, %v294
    %v297 = vmul.u32 %v292, %v293
    %v298 = vmul.u32 %v292, %v294
    %v299 = vshll.u32 %v296, 16
    %v300 = vshrl.u32 %v296, 16
    %v301 = vshll.u32 %v297, 16
    %v302 = vshrl.u32 %v297, 16
    %vm303 = vc.u32 %v295, %v299
    %v304 = vsel %vm303, 1, 0
    %v305 = vadd.s32 %v295, %v299
    %v306 = vadd.s32 %v298, %v304
    %vm307 = vc.u32 %v305, %v301
    %v308 = vsel %vm307, 1, 0
    %v309 = vadd.s32 %v305, %v301
    %v310 = vadd.s32 %v306, %v308
    %v311 = vadd.s32 %v310, %v300
    %v312 = vadd.s32 %v311, %v302
    %v313 = vmul.u32 %v268, %v259
    %v314 = vadd.s32 %v290, %v309
    %vm315 = vc.u32 %v290, %v309
    %v316 = vadd.s32 %v312, 1
    %v317 = vsel %vm315, %v316, %v312
    %v318 = vadd.s32 %v313, %v317
    %v319 = vadd.s32 %v318, 536870912
    %v320 = vshrl.u32 %v319, 30
    %v321 = vshll.u32 %v320, 30
    %v322 = vsub.s32 %v318, %v321
    %vm323 = vcmp.lt.s32.totalorder %v322, 0
    %v324 = vsub.s32 0, %v322
    %v325 = vsel %vm323, %v324, %v322
    %v326 = vclz %v325
    %v327 = vsub.s32 %v326, 2
    %vm328 = vcmp.gt.s32.totalorder 0, %v327
    %v329 = vsel %vm328, 0, %v327
    %v330 = vsub.s32 32, %v329
    %v331 = vshll.u32 %v322, %v329
    %v332 = vshrl.u32 %v314, %v330
    %v333 = vor.u32 %v331, %v332
    %v334 = vsub.s32 4294967266, %v329
    %v335 = vadd.s32 %v334, 127
    %v336 = vshll.u32 %v335, 23
    %v337 = vor.u32 4788187, %v336
    %v338 = vand.u32 2147483647, %v337
    %v340 = vcvt.s32.f32 %v333
    %v341 = vmul.f32 %v340, %v338
    %v342 = vxor.u32 %v341, 2147483648
    %v343 = vsel %vm222, %v342, %v341
    %v344 = vsub.s32 4, %v320
    %v345 = vsel %vm222, %v344, %v320
    %v346 = vsel %vm221, %v218, %v343
    %v347 = vsel %vm221, 0, %v345
    %v348 = vmul.f32 %v346, %v346
    %v349 = vmul.f32 %v348, -0.001358992
    %v350 = vadd.f32 %v349, 0.041655596
    %v351 = vmul.f32 %v348, %v350
    %v352 = vadd.f32 %v351, -0.4999988
    %v353 = vmul.f32 %v348, %v352
    %v354 = vadd.f32 1.0, %v353
    %v355 = vmul.f32 %v346, %v346
    %v356 = vmul.f32 %v355, -0.00019511016
    %v357 = vadd.f32 %v356, 0.008332121
    %v358 = vmul.f32 %v355, %v357
    %v359 = vadd.f32 %v358, -0.16666654
    %v360 = vmul.f32 %v355, %v359
    %v361 = vadd.f32 %v360, 1.0
    %v362 = vmul.f32 %v361, %v346
    %vm363 = vweird.f32 %v218
    %v364 = vadd.s32 %v347, 3
    %v365 = vand.u32 %v364, 3
    %vm366 = vcmp.lt.s32.totalorder %v365, 2
    %vm367 = vcmp.eq.s32.totalorder %v365, 0
    %v368 = vxor.u32 %v362, 2147483648
    %v369 = vsel %vm367, %v354, %v368
    %vm370 = vcmp.eq.s32.totalorder %v365, 2
    %v371 = vxor.u32 %v354, 2147483648
    %v372 = vsel %vm370, %v371, %v362
    %v373 = vsel %vm366, %v369, %v372
    %v374 = vsel %vm363, nan, %v373
    %v375 = vand.u32 2147483647, %v219
    %vm376 = vcmp.le.f32.partialorder %v375, 0.7853982
    %vm377 = vcmp.lt.s32.totalorder %v219, 0
    %v378 = vand.u32 %v219, 2139095040
    %v379 = vshrl.u32 %v378, 23
    %v380 = vsub.s32 %v379, 127
    %v381 = vand.u32 2147483647, %v219
    %v382 = vand.u32 %v381, 8388607
    %v383 = vor.u32 %v382, 8388608
    %v384 = vsub.s32 0, %v383
    %v385 = vadd.s32 %v380, 1
    %vm386 = vcmp.gt.s32.totalorder %v385, 0
    %v387 = vsel %vm386, %v385, 0
    %v388 = vshrl.u32 %v387, 5
    %v389 = vand.u32 %v387, 31
    %v390 = vsub.s32 32, %v389
    %v391 = vshrl.u32 683565275, %v390
    %v392 = vshll.u32 683565275, %v389
    %v393 = vshrl.u32 2475754826, %v390
    %v394 = vor.u32 %v392, %v393
    %v395 = vshll.u32 2475754826, %v389
    %v396 = vshrl.u32 2131351028, %v390
    %v397 = vor.u32 %v395, %v396
    %v398 = vshll.u32 2131351028, %v389
    %v399 = vshrl.u32 2102212464, %v390
    %v400 = vor.u32 %v398, %v399
    %v401 = vshll.u32 2102212464, %v389
    %v402 = vshrl.u32 920167782, %v390
    %v403 = vor.u32 %v401, %v402
    %v404 = vshll.u32 920167782, %v389
    %v405 = vshrl.u32 1326507024, %v390
    %v406 = vor.u32 %v404, %v405
    %vm407 = vcmp.lt.s32.totalorder %v388, 1
    %vm408 = vcmp.lt.s32.totalorder %v388, 2
    %vm409 = vcmp.lt.s32.totalorder %v388, 3
    %vm410 = vcmp.lt.s32.totalorder %v388, 4
    %v411 = vsel %vm407, %v391, %v394
    %v412 = vsel %vm410, %v400, 2102212464
    %v413 = vsel %vm409, %v397, %v412
    %v414 = vsel %vm408, %v411, %v413
    %v415 = vsel %vm407, %v394, %v397
    %v416 = vsel %vm410, %v403, 920167782
    %v417 = vsel %vm409, %v400, %v416
    %v418 = vsel %vm408, %v415, %v417
    %v419 = vsel %vm407, %v397, %v400
    %v420 = vsel %vm410, %v406, 1326507024
    %v421 = vsel %vm409, %v403, %v420
    %v422 = vsel %vm408, %v419, %v421
    %v423 = vshll.u32 %v383, 8
    %v424 = vand.u32 %v423, 65535
    %v425 = vshrl.u32 %v423, 16
    %v426 = vand.u32 %v422, 65535
    %v427 = vshrl.u32 %v422, 16
    %v428 = vmul.u32 %v424, %v426
    %v429 = vmul.u32 %v424, %v427
    %v430 = vmul.u32 %v425, %v426
    %v431 = vmul.u32 %v425, %v427
    %v432 = vshll.u32 %v429, 16
    %v433 = vshrl.u32 %v429, 16
    %v434 = vshll.u32 %v430, 16
    %v435 = vshrl.u32 %v430, 16
    %vm436 = vc.u32 %v428, %v432
    %v437 = vsel %vm436, 1, 0
    %v438 = vadd.s32 %v428, %v432
    %v439 = vadd.s32 %v431, %v437
    %vm440 = vc.u32 %v438, %v434
    %v441 = vsel %vm440, 1, 0
    %v442 = vadd.s32 %v438, %v434
    %v443 = vadd.s32 %v439, %v441
    %v444 = vadd.s32 %v443, %v433
    %v445 = vadd.s32 %v444, %v435
    %v446 = vand.u32 %v423, 65535
    %v447 = vshrl.u32 %v423, 16
    %v448 = vand.u32 %v418, 65535
    %v449 = vshrl.u32 %v418, 16
    %v450 = vmul.u32 %v446, %v448
    %v451 = vmul.u32 %v446, %v449
    %v452 = vmul.u32 %v447, %v448
    %v453 = vmul.u32 %v447, %v449
    %v454 = vshll.u32 %v451, 16
    %v455 = vshrl.u32 %v451, 16
    %v456 = vshll.u32 %v452, 16
    %v457 = vshrl.u32 %v452, 16
    %vm458 = vc.u32 %v450, %v454
    %v459 = vsel %vm458, 1, 0
    %v460 = vadd.s32 %v450, %v454
    %v461 = vadd.s32 %v453, %v459
    %vm462 = vc.u32 %v460, %v456
    %v463 = vsel %vm462, 1, 0
    %v464 = vadd.s32 %v460, %v456
    %v465 = vadd.s32 %v461, %v463
    %v466 = vadd.s32 %v465, %v455
    %v467 = vadd.s32 %v466, %v457
    %v468 = vmul.u32 %v423, %v414
    %v469 = vadd.s32 %v445, %v464
    %vm470 = vc.u32 %v445, %v464
    %v471 = vadd.s32 %v467, 1
    %v472 = vsel %vm470, %v471, %v467
    %v473 = vadd.s32 %v468, %v472
    %v474 = vadd.s32 %v473, 536870912
    %v475 = vshrl.u32 %v474, 30
    %v476 = vshll.u32 %v475, 30
    %v477 = vsub.s32 %v473, %v476
    %vm478 = vcmp.lt.s32.totalorder %v477, 0
    %v479 = vsub.s32 0, %v477
    %v480 = vsel %vm478, %v479, %v477
    %v481 = vclz %v480
    %v482 = vsub.s32 %v481, 2
    %vm483 = vcmp.gt.s32.totalorder 0, %v482
    %v484 = vsel %vm483, 0, %v482
    %v485 = vsub.s32 32, %v484
    %v486 = vshll.u32 %v477, %v484
    %v487 = vshrl.u32 %v469, %v485
    %v488 = vor.u32 %v486, %v487
    %v489 = vsub.s32 4294967266, %v484
    %v490 = vadd.s32 %v489, 127
    %v491 = vshll.u32 %v490, 23
    %v492 = vor.u32 4788187, %v491
    %v493 = vand.u32 2147483647, %v492
    %v495 = vcvt.s32.f32 %v488
    %v496 = vmul.f32 %v495, %v493
    %v497 = vxor.u32 %v496, 2147483648
    %v498 = vsel %vm377, %v497, %v496
    %v499 = vsub.s32 4, %v475
    %v500 = vsel %vm377, %v499, %v475
    %v501 = vsel %vm376, %v219, %v498
    %v502 = vsel %vm376, 0, %v500
    %v503 = vmul.f32 %v501, %v501
    %v504 = vmul.f32 %v503, -0.001358992
    %v505 = vadd.f32 %v504, 0.041655596
    %v506 = vmul.f32 %v503, %v505
    %v507 = vadd.f32 %v506, -0.4999988
    %v508 = vmul.f32 %v503, %v507
    %v509 = vadd.f32 1.0, %v508
    %v510 = vmul.f32 %v501, %v501
    %v511 = vmul.f32 %v510, -0.00019511016
    %v512 = vadd.f32 %v511, 0.008332121
    %v513 = vmul.f32 %v510, %v512
    %v514 = vadd.f32 %v513, -0.16666654
    %v515 = vmul.f32 %v510, %v514
    %v516 = vadd.f32 %v515, 1.0
    %v517 = vmul.f32 %v516, %v501
    %vm518 = vweird.f32 %v219
    %v519 = vadd.s32 %v502, 3
    %v520 = vand.u32 %v519, 3
    %vm521 = vcmp.lt.s32.totalorder %v520, 2
    %vm522 = vcmp.eq.s32.totalorder %v520, 0
    %v523 = vxor.u32 %v517, 2147483648
    %v524 = vsel %vm522, %v509, %v523
    %vm525 = vcmp.eq.s32.totalorder %v520, 2
    %v526 = vxor.u32 %v509, 2147483648
    %v527 = vsel %vm525, %v526, %v517
    %v528 = vsel %vm521, %v524, %v527
    %v529 = vsel %vm518, nan, %v528
    %531 = vset.pattern.permute.xlu0 0
    %532 = vperm.xlu0 %531, %v194
    %v533 = vpop.permute.xlu0 %532
    %536 = vset.pattern.permute.xlu0 0
    %537 = vperm.xlu0 %536, %v195
    %v538 = vpop.permute.xlu0 %537
    %v540 = vmul.f32 %v374, %v533
    %v541 = vmul.f32 %v529, %v538
    %v542 = vlaneseq
    %v543 = vshrl.u32 %v542, 7
    %v544 = vlaneseq
    %v545 = vand.u32 %v544, 127
    %vm546 = vcmp.gt.s32.totalorder %v545, %v543
    %v547 = vld [vmem:[#allocation2] sm:$0x1]
    %v548 = vld [vmem:[#allocation2 + $0x1] sm:$0x1]
    %vm549 = vcmp.gt.s32.totalorder %v547, 0
    %vm550 = vcmp.gt.s32.totalorder %v548, 0
    %v551 = vsel %vm546, 1, 0
    %vm552 = vcmp.eq.s32.totalorder %v551, 1
    %v553 = vsel %vm549, 1, 0
    %v554 = vsel %vm550, 1, 0
    %v555 = vperm.slane %v553, 0
    %v556 = vperm.slane %v554, 0
    %vm557 = vcmp.eq.s32.totalorder %v555, 1
    %vm558 = vcmp.eq.s32.totalorder %v556, 1
    %vm559 = vmor %vm552, %vm557
    %vm560 = vmor %vm552, %vm558
    %v561 = vld [vmem:[%s0] sm:$0xff]
    %v562 = vld [vmem:[%s0 + $0x8] sm:$0xff]
    %v563 = vadd.f32 %v561, %v540
    %v564 = vadd.f32 %v562, %v541
    %v565 = vpack.c.bf16 %v564, %v563
    %v566 = vld [vmem:[%s6] sm:$0xf]
    %v567 = vld [vmem:[%s6 + $0x4] sm:$0xf]
    %v568 = vld [vmem:[%s6 + $0x8] sm:$0xf]
    %v569 = vld [vmem:[%s6 + $0xc] sm:$0xf]
    %v574 = vunpack.c.l.b16 %v566
    %v575 = vunpack.c.l.b16 %v567
    %v576 = vunpack.c.l.b16 %v568
    %v577 = vunpack.c.l.b16 %v569
    %v578 = vpack.c.b16 %v575, %v574
    %v579 = vpack.c.b16 %v577, %v576
    %vm582 = vcmask 261120
    %v584 = vsel %vm582, %v565, 0
    %586 = vmatpush.bf16.msra.mxu0 0
    %587 = vmatpush.bf16.msra.mxu0 0
    %588 = vmatpush.bf16.msra.mxu0 0
    %589 = vmatpush.bf16.msra.mxu0 0
    %590 = vmatpush.bf16.msra.mxu0 0
    %591 = vmatpush.bf16.msra.mxu0 0
    %592 = vmatpush.bf16.msra.mxu0 %v579
    %593 = vmatpush.bf16.msra.mxu0 %v578
    %594 = vmatmul.bf16.gmra.mxu0 %v584
    %v595 = vpop.f32.mrf.mxu0
    %v596 = vadd.f32 0.0, %v595
    %v597 = vpop.f32.mrf.mxu0
    %v598 = vadd.f32 0.0, %v597
    %599 = vdwg.mxu0
    %v600 = vpack.c.bf16 %v596, %v596
    %v601 = vpack.c.bf16 %v598, %v598
    %v603 = vunpack.c.l.b16 %v600
    %v604 = vpack.c.b16 %v603, %v603
    %605 = vrot.lane.b32.xlu0 %v604, 96
    %v606 = vpop.permute.xlu0 %605
    %vm607 = vcmask 130048
    %v609 = vsel %vm607, %v600, 0
    %v612 = vsel %vm607, %v606, 0
    %614 = vmatpush.bf16.xpose.msra.mxu0 0
    %615 = vmatpush.bf16.xpose.msra.mxu0 0
    %616 = vmatpush.bf16.xpose.msra.mxu0 0
    %617 = vmatpush.bf16.xpose.msra.mxu0 0
    %618 = vmatpush.bf16.xpose.msra.mxu0 0
    %619 = vmatpush.bf16.xpose.msra.mxu0 0
    %620 = vmatpush.bf16.xpose.msra.mxu0 0
    %621 = vmatpush.bf16.xpose.msra.mxu0 %v612
    %622 = vmatmul.bf16.gmra.mxu0 %v609
    %v623 = vpop.f32.mrf.mxu0
    %v624 = vadd.f32 0.0, %v623
    %v625 = vpop.f32.mrf.mxu0
    %626 = vdwg.mxu0
    %v628 = vunpack.c.l.b16 %v601
    %v629 = vpack.c.b16 %v628, %v628
    %630 = vrot.lane.b32.xlu0 %v629, 96
    %v631 = vpop.permute.xlu0 %630
    %v633 = vsel %vm607, %v601, 0
    %v636 = vsel %vm607, %v631, 0
    %638 = vmatpush.bf16.xpose.msra.mxu0 0
    %639 = vmatpush.bf16.xpose.msra.mxu0 0
    %640 = vmatpush.bf16.xpose.msra.mxu0 0
    %641 = vmatpush.bf16.xpose.msra.mxu0 0
    %642 = vmatpush.bf16.xpose.msra.mxu0 0
    %643 = vmatpush.bf16.xpose.msra.mxu0 0
    %644 = vmatpush.bf16.xpose.msra.mxu0 0
    %645 = vmatpush.bf16.xpose.msra.mxu0 %v636
    %646 = vmatmul.bf16.gmra.mxu0 %v633
    %v647 = vpop.f32.mrf.mxu0
    %v648 = vadd.f32 0.0, %v647
    %v649 = vpop.f32.mrf.mxu0
    %650 = vdwg.mxu0
    %v651 = vsel %vm559, -1e+09, %v624
    %v652 = vsel %vm560, -1e+09, %v648
    %vm653 = vcmask 64512
    %v654 = vsel %vm653, %v651, -inf
    %655 = vmax.xlane.f32.xlu0 %v654
    %v656 = vpop.xlane.xlu0 %655
    %v657 = vsel %vm653, %v652, -inf
    %658 = vmax.xlane.f32.xlu0 %v657
    %v659 = vpop.xlane.xlu0 %658
    %v660 = vsub.f32 %v651, %v656
    %v661 = vsub.f32 %v652, %v659
    %v662 = vmul.f32 %v660, 1.442695
    %v663 = vpow.pop %v662
    %v664 = vmul.f32 %v661, 1.442695
    %v665 = vpow.pop %v664
    %v666 = vsel %vm653, %v663, 0.0
    %667 = vadd.xlane.f32.xlu0 %v666
    %v668 = vpop.xlane.xlu0 %667
    %v669 = vsel %vm653, %v665, 0.0
    %670 = vadd.xlane.f32.xlu0 %v669
    %v671 = vpop.xlane.xlu0 %670
    %v672 = vrcp.pop %v668
    %v673 = vrcp.pop %v671
    %v674 = vmul.f32 %v663, %v672
    %v675 = vmul.f32 %v665, %v673
    %v676 = vpack.c.bf16 %v674, %v674
    %v677 = vpack.c.bf16 %v675, %v675
    %678 = vrot.lane.b32.xlu0 %v604, 64
    %v679 = vpop.permute.xlu0 %678
    %v681 = vsel %vm653, %v676, 0
    %vm683 = vcmask 1043456
    %v685 = vsel %vm683, %v679, 0
    %687 = vmatpush.bf16.msra.mxu0 0
    %688 = vmatpush.bf16.msra.mxu0 0
    %689 = vmatpush.bf16.msra.mxu0 0
    %690 = vmatpush.bf16.msra.mxu0 0
    %691 = vmatpush.bf16.msra.mxu0 0
    %692 = vmatpush.bf16.msra.mxu0 0
    %693 = vmatpush.bf16.msra.mxu0 0
    %694 = vmatpush.bf16.msra.mxu0 %v685
    %695 = vmatmul.bf16.gmra.mxu0 %v681
    %v696 = vpop.f32.mrf.mxu0
    %v697 = vadd.f32 0.0, %v696
    %v698 = vpop.f32.mrf.mxu0
    %699 = vdwg.mxu0
    %700 = vrot.lane.b32.xlu0 %v629, 64
    %v701 = vpop.permute.xlu0 %700
    %v703 = vsel %vm653, %v677, 0
    %v706 = vsel %vm683, %v701, 0
    %708 = vmatpush.bf16.msra.mxu0 0
    %709 = vmatpush.bf16.msra.mxu0 0
    %710 = vmatpush.bf16.msra.mxu0 0
    %711 = vmatpush.bf16.msra.mxu0 0
    %712 = vmatpush.bf16.msra.mxu0 0
    %713 = vmatpush.bf16.msra.mxu0 0
    %714 = vmatpush.bf16.msra.mxu0 0
    %715 = vmatpush.bf16.msra.mxu0 %v706
    %716 = vmatmul.bf16.gmra.mxu0 %v703
    %v717 = vpop.f32.mrf.mxu0
    %v718 = vadd.f32 0.0, %v717
    %v719 = vpop.f32.mrf.mxu0
    %720 = vdwg.mxu0
    %v721 = vpack.c.bf16 %v697, %v697
    %v722 = vpack.c.bf16 %v718, %v718
    %723 = vrot.lane.b32.xlu0 %v604, 112
    %v724 = vpop.permute.xlu0 %723
    %725 = vrot.lane.b32.xlu0 %v604, 80
    %v726 = vpop.permute.xlu0 %725
    %v728 = vsel %vm607, %v724, 0
    %v731 = vsel %vm607, %v726, 0
    %733 = vmatpush.bf16.xpose.msra.mxu0 0
    %734 = vmatpush.bf16.xpose.msra.mxu0 0
    %735 = vmatpush.bf16.xpose.msra.mxu0 0
    %736 = vmatpush.bf16.xpose.msra.mxu0 0
    %737 = vmatpush.bf16.xpose.msra.mxu0 0
    %738 = vmatpush.bf16.xpose.msra.mxu0 0
    %739 = vmatpush.bf16.xpose.msra.mxu0 0
    %740 = vmatpush.bf16.xpose.msra.mxu0 %v731
    %741 = vmatmul.bf16.gmra.mxu0 %v728
    %v742 = vpop.f32.mrf.mxu0
    %v743 = vadd.f32 0.0, %v742
    %v744 = vpop.f32.mrf.mxu0
    %745 = vdwg.mxu0
    %746 = vrot.lane.b32.xlu0 %v629, 112
    %v747 = vpop.permute.xlu0 %746
    %748 = vrot.lane.b32.xlu0 %v629, 80
    %v749 = vpop.permute.xlu0 %748
    %v751 = vsel %vm607, %v747, 0
    %v754 = vsel %vm607, %v749, 0
    %756 = vmatpush.bf16.xpose.msra.mxu0 0
    %757 = vmatpush.bf16.xpose.msra.mxu0 0
    %758 = vmatpush.bf16.xpose.msra.mxu0 0
    %759 = vmatpush.bf16.xpose.msra.mxu0 0
    %760 = vmatpush.bf16.xpose.msra.mxu0 0
    %761 = vmatpush.bf16.xpose.msra.mxu0 0
    %762 = vmatpush.bf16.xpose.msra.mxu0 0
    %763 = vmatpush.bf16.xpose.msra.mxu0 %v754
    %764 = vmatmul.bf16.gmra.mxu0 %v751
    %v765 = vpop.f32.mrf.mxu0
    %v766 = vadd.f32 0.0, %v765
    %v767 = vpop.f32.mrf.mxu0
    %768 = vdwg.mxu0
    %v769 = vsel %vm559, -1e+09, %v743
    %v770 = vsel %vm560, -1e+09, %v766
    %v771 = vsel %vm653, %v769, -inf
    %772 = vmax.xlane.f32.xlu0 %v771
    %v773 = vpop.xlane.xlu0 %772
    %v774 = vsel %vm653, %v770, -inf
    %775 = vmax.xlane.f32.xlu0 %v774
    %v776 = vpop.xlane.xlu0 %775
    %v777 = vsub.f32 %v769, %v773
    %v778 = vsub.f32 %v770, %v776
    %v779 = vmul.f32 %v777, 1.442695
    %v780 = vpow.pop %v779
    %v781 = vmul.f32 %v778, 1.442695
    %v782 = vpow.pop %v781
    %v783 = vsel %vm653, %v780, 0.0
    %784 = vadd.xlane.f32.xlu0 %v783
    %v785 = vpop.xlane.xlu0 %784
    %v786 = vsel %vm653, %v782, 0.0
    %787 = vadd.xlane.f32.xlu0 %v786
    %v788 = vpop.xlane.xlu0 %787
    %v789 = vrcp.pop %v785
    %v790 = vrcp.pop %v788
    %v791 = vmul.f32 %v780, %v789
    %v792 = vmul.f32 %v782, %v790
    %v793 = vpack.c.bf16 %v791, %v791
    %v794 = vpack.c.bf16 %v792, %v792
    %795 = vrot.lane.b32.xlu0 %v604, 48
    %v796 = vpop.permute.xlu0 %795
    %v798 = vsel %vm653, %v793, 0
    %v801 = vsel %vm683, %v796, 0
    %803 = vmatpush.bf16.msra.mxu0 0
    %804 = vmatpush.bf16.msra.mxu0 0
    %805 = vmatpush.bf16.msra.mxu0 0
    %806 = vmatpush.bf16.msra.mxu0 0
    %807 = vmatpush.bf16.msra.mxu0 0
    %808 = vmatpush.bf16.msra.mxu0 0
    %809 = vmatpush.bf16.msra.mxu0 0
    %810 = vmatpush.bf16.msra.mxu0 %v801
    %811 = vmatmul.bf16.gmra.mxu0 %v798
    %v812 = vpop.f32.mrf.mxu0
    %v813 = vadd.f32 0.0, %v812
    %v814 = vpop.f32.mrf.mxu0
    %815 = vdwg.mxu0
    %816 = vrot.lane.b32.xlu0 %v629, 48
    %v817 = vpop.permute.xlu0 %816
    %v819 = vsel %vm653, %v794, 0
    %v822 = vsel %vm683, %v817, 0
    %824 = vmatpush.bf16.msra.mxu0 0
    %825 = vmatpush.bf16.msra.mxu0 0
    %826 = vmatpush.bf16.msra.mxu0 0
    %827 = vmatpush.bf16.msra.mxu0 0
    %828 = vmatpush.bf16.msra.mxu0 0
    %829 = vmatpush.bf16.msra.mxu0 0
    %830 = vmatpush.bf16.msra.mxu0 0
    %831 = vmatpush.bf16.msra.mxu0 %v822
    %832 = vmatmul.bf16.gmra.mxu0 %v819
    %v833 = vpop.f32.mrf.mxu0
    %v834 = vadd.f32 0.0, %v833
    %v835 = vpop.f32.mrf.mxu0
    %836 = vdwg.mxu0
    %v837 = vpack.c.bf16 %v813, %v813
    %v838 = vpack.c.bf16 %v834, %v834
    %v841 = vunpack.c.l.b16 %v837
    %v842 = vunpack.c.l.b16 %v838
    %v843 = vpack.c.b16 %v841, %v841
    %v844 = vpack.c.b16 %v842, %v842
    %845 = vrot.lane.b32.xlu0 %v843, 16
    %v846 = vpop.permute.xlu0 %845
    %847 = vrot.lane.b32.xlu0 %v844, 16
    %v848 = vpop.permute.xlu0 %847
    %v851 = vsel %vm607, %v721, %v846
    %v854 = vsel %vm607, %v722, %v848
    %v855 = vld [vmem:[%s7] sm:$0xf]
    %v856 = vld [vmem:[%s7 + $0x4] sm:$0xf]
    %v857 = vld [vmem:[%s7 + $0x8] sm:$0xf]
    %v858 = vld [vmem:[%s7 + $0xc] sm:$0xf]
    %v859 = vld [vmem:[#allocation8] sm:$0x1]
    %v861 = vperm.slane %v859, 0
    %v865 = vunpack.c.l.b16 %v851
    %v866 = vunpack.c.l.b16 %v854
    %v867 = vpack.c.b16 %v866, %v865
    %v872 = vunpack.c.l.b16 %v855
    %v873 = vunpack.c.l.b16 %v856
    %v874 = vunpack.c.l.b16 %v857
    %v875 = vunpack.c.l.b16 %v858
    %v876 = vpack.c.b16 %v873, %v872
    %v877 = vpack.c.b16 %v875, %v874
    %v881 = vsel %vm582, %v867, 0
    %883 = vmatpush.bf16.msra.mxu0 0
    %884 = vmatpush.bf16.msra.mxu0 0
    %885 = vmatpush.bf16.msra.mxu0 0
    %886 = vmatpush.bf16.msra.mxu0 0
    %887 = vmatpush.bf16.msra.mxu0 0
    %888 = vmatpush.bf16.msra.mxu0 0
    %889 = vmatpush.bf16.msra.mxu0 %v877
    %890 = vmatpush.bf16.msra.mxu0 %v876
    %891 = vmatmul.bf16.gmra.mxu0 %v881
    %v892 = vpop.f32.mrf.mxu0
    %v893 = vadd.f32 %v861, %v892
    %v894 = vpop.f32.mrf.mxu0
    %v895 = vadd.f32 %v861, %v894
    %896 = vdwg.mxu0
    %v897 = vadd.f32 %v893, %v563
    %v898 = vadd.f32 %v895, %v564
    %v899 = vld [vmem:[#allocation10] sm:$0x1]
    %v900 = vld [vmem:[#allocation11] sm:$0x1]
    %v901 = vsel %vm582, %v897, 0.0
    %902 = vadd.xlane.f32.xlu0 %v901
    %v903 = vpop.xlane.xlu0 %902
    %v904 = vsel %vm582, %v898, 0.0
    %905 = vadd.xlane.f32.xlu0 %v904
    %v906 = vpop.xlane.xlu0 %905
    %v907 = vrcp.pop 32.0
    %v908 = vmul.f32 32.0, %v907
    %v909 = vsub.f32 1.0, %v908
    %v910 = vmul.f32 %v907, %v909
    %v911 = vadd.f32 %v907, %v910
    %vm912 = vweird.f32 %v907
    %v913 = vsel %vm912, %v907, %v911
    %v914 = vmul.f32 %v903, %v913
    %v915 = vmul.f32 %v906, %v913
    %v916 = vsub.f32 %v897, %v914
    %v917 = vsub.f32 %v898, %v915
    %v918 = vmul.f32 %v916, %v916
    %v919 = vmul.f32 %v917, %v917
    %v920 = vsel %vm582, %v918, 0.0
    %921 = vadd.xlane.f32.xlu0 %v920
    %v922 = vpop.xlane.xlu0 %921
    %v923 = vsel %vm582, %v919, 0.0
    %924 = vadd.xlane.f32.xlu0 %v923
    %v925 = vpop.xlane.xlu0 %924
    %v926 = vmul.f32 %v922, %v913
    %v927 = vmul.f32 %v925, %v913
    %v928 = vadd.f32 %v926, 1e-06
    %v929 = vadd.f32 %v927, 1e-06
    %v930 = vrsqrt.pop %v928
    %v931 = vmul.f32 %v930, %v928
    %v932 = vmul.f32 %v931, %v930
    %v933 = vmul.f32 0.5, %v932
    %v934 = vsub.f32 1.5, %v933
    %v935 = vmul.f32 %v930, %v934
    %vm936 = vweird.f32 %v928
    %vm937 = vweird.f32 %v930
    %vm938 = vmor %vm936, %vm937
    %v939 = vsel %vm938, %v930, %v935
    %v940 = vrsqrt.pop %v929
    %v941 = vmul.f32 %v940, %v929
    %v942 = vmul.f32 %v941, %v940
    %v943 = vmul.f32 0.5, %v942
    %v944 = vsub.f32 1.5, %v943
    %v945 = vmul.f32 %v940, %v944
    %vm946 = vweird.f32 %v929
    %vm947 = vweird.f32 %v940
    %vm948 = vmor %vm946, %vm947
    %v949 = vsel %vm948, %v940, %v945
    %v950 = vmul.f32 %v916, %v939
    %v951 = vmul.f32 %v917, %v949
    %v953 = vperm.slane %v899, 0
    %v955 = vmul.f32 %v950, %v953
    %v956 = vmul.f32 %v951, %v953
    %v958 = vperm.slane %v900, 0
    %v960 = vadd.f32 %v955, %v958
    %v961 = vadd.f32 %v956, %v958
    %v962 = vmul.f32 %v960, %v533
    %v963 = vmul.f32 %v961, %v538
    %v964 = vpack.c.bf16 %v963, %v962
    %v965 = vld [vmem:[%s11] sm:$0xf]
    %v966 = vld [vmem:[%s11 + $0x4] sm:$0xf]
    %v967 = vld [vmem:[%s11 + $0x8] sm:$0xf]
    %v968 = vld [vmem:[%s11 + $0xc] sm:$0xf]
    %v969 = vld [vmem:[#allocation13] sm:$0x1]
    %v971 = vperm.slane %v969, 0
    %v977 = vunpack.c.l.b16 %v965
    %v978 = vunpack.c.l.b16 %v966
    %v979 = vunpack.c.l.b16 %v967
    %v980 = vunpack.c.l.b16 %v968
    %v981 = vpack.c.b16 %v978, %v977
    %v982 = vpack.c.b16 %v980, %v979
    %v986 = vsel %vm582, %v964, 0
    %988 = vmatpush.bf16.msra.mxu0 0
    %989 = vmatpush.bf16.msra.mxu0 0
    %990 = vmatpush.bf16.msra.mxu0 0
    %991 = vmatpush.bf16.msra.mxu0 0
    %992 = vmatpush.bf16.msra.mxu0 0
    %993 = vmatpush.bf16.msra.mxu0 0
    %994 = vmatpush.bf16.msra.mxu0 %v982
    %995 = vmatpush.bf16.msra.mxu0 %v981
    %996 = vmatmul.bf16.gmra.mxu0 %v986
    %v997 = vpop.f32.mrf.mxu0
    %v998 = vadd.f32 %v971, %v997
    %v999 = vpop.f32.mrf.mxu0
    %v1000 = vadd.f32 %v971, %v999
    %1001 = vdwg.mxu0
    %v1002 = vmul.f32 %v998, 0.5
    %v1003 = vmul.f32 %v1000, 0.5
    %v1004 = vmul.f32 %v998, 0.044715
    %v1005 = vmul.f32 %v1000, 0.044715
    %v1006 = vmul.f32 %v1004, %v998
    %v1007 = vmul.f32 %v1005, %v1000
    %v1008 = vmul.f32 %v1006, %v998
    %v1009 = vmul.f32 %v1007, %v1000
    %v1010 = vadd.f32 %v998, %v1008
    %v1011 = vadd.f32 %v1000, %v1009
    %v1012 = vmul.f32 %v1010, 0.7978846
    %v1013 = vmul.f32 %v1011, 0.7978846
    %v1014 = vtanh.pop %v1012
    %v1015 = vtanh.pop %v1013
    %v1016 = vadd.f32 %v1014, 1.0
    %v1017 = vadd.f32 %v1015, 1.0
    %v1018 = vmul.f32 %v1002, %v1016
    %v1019 = vmul.f32 %v1003, %v1017
    %v1020 = vpack.c.bf16 %v1019, %v1018
    %v1021 = vld [vmem:[%s13] sm:$0xf]
    %v1022 = vld [vmem:[%s13 + $0x4] sm:$0xf]
    %v1023 = vld [vmem:[%s13 + $0x8] sm:$0xf]
    %v1024 = vld [vmem:[%s13 + $0xc] sm:$0xf]
    %v1025 = vld [vmem:[%s13 + $0x10] sm:$0xf]
    %v1026 = vld [vmem:[%s13 + $0x14] sm:$0xf]
    %v1027 = vld [vmem:[%s13 + $0x18] sm:$0xf]
    %v1028 = vld [vmem:[%s13 + $0x1c] sm:$0xf]
    %v1029 = vld [vmem:[#allocation14] sm:$0x1]
    %v1031 = vperm.slane %v1029, 0
    %v1041 = vunpack.c.l.b16 %v1021
    %v1042 = vunpack.c.l.b16 %v1022
    %v1043 = vunpack.c.l.b16 %v1023
    %v1044 = vunpack.c.l.b16 %v1024
    %v1045 = vunpack.c.l.b16 %v1025
    %v1046 = vunpack.c.l.b16 %v1026
    %v1047 = vunpack.c.l.b16 %v1027
    %v1048 = vunpack.c.l.b16 %v1028
    %v1049 = vpack.c.b16 %v1042, %v1041
    %v1050 = vpack.c.b16 %v1044, %v1043
    %v1051 = vpack.c.b16 %v1046, %v1045
    %v1052 = vpack.c.b16 %v1048, %v1047
    %vm1057 = vcmask 523264
    %v1059 = vsel %vm1057, %v1020, 0
    %1061 = vmatpush.bf16.msra.mxu0 0
    %1062 = vmatpush.bf16.msra.mxu0 0
    %1063 = vmatpush.bf16.msra.mxu0 0
    %1064 = vmatpush.bf16.msra.mxu0 0
    %1065 = vmatpush.bf16.msra.mxu0 %v1052
    %1066 = vmatpush.bf16.msra.mxu0 %v1051
    %1067 = vmatpush.bf16.msra.mxu0 %v1050
    %1068 = vmatpush.bf16.msra.mxu0 %v1049
    %1069 = vmatmul.bf16.gmra.mxu0 %v1059
    %v1070 = vpop.f32.mrf.mxu0
    %v1071 = vadd.f32 %v1031, %v1070
    %v1072 = vpop.f32.mrf.mxu0
    %v1073 = vadd.f32 %v1031, %v1072
    %1074 = vdwg.mxu0
    %v1075 = vadd.f32 %v1071, %v962
    %v1076 = vadd.f32 %v1073, %v963
    %v1077 = vld [vmem:[#allocation16] sm:$0x1]
    %v1078 = vld [vmem:[%s16] sm:$0x1]
    %v1079 = vsel %vm582, %v1075, 0.0
    %1080 = vadd.xlane.f32.xlu0 %v1079
    %v1081 = vpop.xlane.xlu0 %1080
    %v1082 = vsel %vm582, %v1076, 0.0
    %1083 = vadd.xlane.f32.xlu0 %v1082
    %v1084 = vpop.xlane.xlu0 %1083
    %v1085 = vmul.f32 %v1081, %v913
    %v1086 = vmul.f32 %v1084, %v913
    %v1087 = vsub.f32 %v1075, %v1085
    %v1088 = vsub.f32 %v1076, %v1086
    %v1089 = vmul.f32 %v1087, %v1087
    %v1090 = vmul.f32 %v1088, %v1088
    %v1091 = vsel %vm582, %v1089, 0.0
    %1092 = vadd.xlane.f32.xlu0 %v1091
    %v1093 = vpop.xlane.xlu0 %1092
    %v1094 = vsel %vm582, %v1090, 0.0
    %1095 = vadd.xlane.f32.xlu0 %v1094
    %v1096 = vpop.xlane.xlu0 %1095
    %v1097 = vmul.f32 %v1093, %v913
    %v1098 = vmul.f32 %v1096, %v913
    %v1099 = vadd.f32 %v1097, 1e-06
    %v1100 = vadd.f32 %v1098, 1e-06
    %v1101 = vrsqrt.pop %v1099
    %v1102 = vmul.f32 %v1101, %v1099
    %v1103 = vmul.f32 %v1102, %v1101
    %v1104 = vmul.f32 0.5, %v1103
    %v1105 = vsub.f32 1.5, %v1104
    %v1106 = vmul.f32 %v1101, %v1105
    %vm1107 = vweird.f32 %v1099
    %vm1108 = vweird.f32 %v1101
    %vm1109 = vmor %vm1107, %vm1108
    %v1110 = vsel %vm1109, %v1101, %v1106
    %v1111 = vrsqrt.pop %v1100
    %v1112 = vmul.f32 %v1111, %v1100
    %v1113 = vmul.f32 %v1112, %v1111
    %v1114 = vmul.f32 0.5, %v1113
    %v1115 = vsub.f32 1.5, %v1114
    %v1116 = vmul.f32 %v1111, %v1115
    %vm1117 = vweird.f32 %v1100
    %vm1118 = vweird.f32 %v1111
    %vm1119 = vmor %vm1117, %vm1118
    %v1120 = vsel %vm1119, %v1111, %v1116
    %v1121 = vmul.f32 %v1087, %v1110
    %v1122 = vmul.f32 %v1088, %v1120
    %v1124 = vperm.slane %v1077, 0
    %v1126 = vmul.f32 %v1121, %v1124
    %v1127 = vmul.f32 %v1122, %v1124
    %v1129 = vperm.slane %v1078, 0
    %v1131 = vadd.f32 %v1126, %v1129
    %v1132 = vadd.f32 %v1127, %v1129
    %v1133 = vmul.f32 %v1131, %v533
    %v1134 = vmul.f32 %v1132, %v538
    %v1135 = vadd.f32 %v1133, %v540
    %v1136 = vadd.f32 %v1134, %v541
    %v1137 = vpack.c.bf16 %v1136, %v1135
    %s1138 = scalar_lea.vmem %s6, 16
    %v1139 = vld [vmem:[%s1138] sm:$0xf]
    %v1140 = vld [vmem:[%s1138 + $0x4] sm:$0xf]
    %v1141 = vld [vmem:[%s1138 + $0x8] sm:$0xf]
    %v1142 = vld [vmem:[%s1138 + $0xc] sm:$0xf]
    %v1147 = vunpack.c.l.b16 %v1139
    %v1148 = vunpack.c.l.b16 %v1140
    %v1149 = vunpack.c.l.b16 %v1141
    %v1150 = vunpack.c.l.b16 %v1142
    %v1151 = vpack.c.b16 %v1148, %v1147
    %v1152 = vpack.c.b16 %v1150, %v1149
    %v1156 = vsel %vm582, %v1137, 0
    %1158 = vmatpush.bf16.msra.mxu0 0
    %1159 = vmatpush.bf16.msra.mxu0 0
    %1160 = vmatpush.bf16.msra.mxu0 0
    %1161 = vmatpush.bf16.msra.mxu0 0
    %1162 = vmatpush.bf16.msra.mxu0 0
    %1163 = vmatpush.bf16.msra.mxu0 0
    %1164 = vmatpush.bf16.msra.mxu0 %v1152
    %1165 = vmatpush.bf16.msra.mxu0 %v1151
    %1166 = vmatmul.bf16.gmra.mxu0 %v1156
    %v1167 = vpop.f32.mrf.mxu0
    %v1168 = vadd.f32 0.0, %v1167
    %v1169 = vpop.f32.mrf.mxu0
    %v1170 = vadd.f32 0.0, %v1169
    %1171 = vdwg.mxu0
    %v1172 = vpack.c.bf16 %v1168, %v1168
    %v1173 = vpack.c.bf16 %v1170, %v1170
    %v1175 = vunpack.c.l.b16 %v1172
    %v1176 = vpack.c.b16 %v1175, %v1175
    %1177 = vrot.lane.b32.xlu0 %v1176, 96
    %v1178 = vpop.permute.xlu0 %1177
    %v1180 = vsel %vm607, %v1172, 0
    %v1183 = vsel %vm607, %v1178, 0
    %1185 = vmatpush.bf16.xpose.msra.mxu0 0
    %1186 = vmatpush.bf16.xpose.msra.mxu0 0
    %1187 = vmatpush.bf16.xpose.msra.mxu0 0
    %1188 = vmatpush.bf16.xpose.msra.mxu0 0
    %1189 = vmatpush.bf16.xpose.msra.mxu0 0
    %1190 = vmatpush.bf16.xpose.msra.mxu0 0
    %1191 = vmatpush.bf16.xpose.msra.mxu0 0
    %1192 = vmatpush.bf16.xpose.msra.mxu0 %v1183
    %1193 = vmatmul.bf16.gmra.mxu0 %v1180
    %v1194 = vpop.f32.mrf.mxu0
    %v1195 = vadd.f32 0.0, %v1194
    %v1196 = vpop.f32.mrf.mxu0
    %1197 = vdwg.mxu0
    %v1199 = vunpack.c.l.b16 %v1173
    %v1200 = vpack.c.b16 %v1199, %v1199
    %1201 = vrot.lane.b32.xlu0 %v1200, 96
    %v1202 = vpop.permute.xlu0 %1201
    %v1204 = vsel %vm607, %v1173, 0
    %v1207 = vsel %vm607, %v1202, 0
    %1209 = vmatpush.bf16.xpose.msra.mxu0 0
    %1210 = vmatpush.bf16.xpose.msra.mxu0 0
    %1211 = vmatpush.bf16.xpose.msra.mxu0 0
    %1212 = vmatpush.bf16.xpose.msra.mxu0 0
    %1213 = vmatpush.bf16.xpose.msra.mxu0 0
    %1214 = vmatpush.bf16.xpose.msra.mxu0 0
    %1215 = vmatpush.bf16.xpose.msra.mxu0 0
    %1216 = vmatpush.bf16.xpose.msra.mxu0 %v1207
    %1217 = vmatmul.bf16.gmra.mxu0 %v1204
    %v1218 = vpop.f32.mrf.mxu0
    %v1219 = vadd.f32 0.0, %v1218
    %v1220 = vpop.f32.mrf.mxu0
    %1221 = vdwg.mxu0
    %v1222 = vsel %vm559, -1e+09, %v1195
    %v1223 = vsel %vm560, -1e+09, %v1219
    %v1224 = vsel %vm653, %v1222, -inf
    %1225 = vmax.xlane.f32.xlu0 %v1224
    %v1226 = vpop.xlane.xlu0 %1225
    %v1227 = vsel %vm653, %v1223, -inf
    %1228 = vmax.xlane.f32.xlu0 %v1227
    %v1229 = vpop.xlane.xlu0 %1228
    %v1230 = vsub.f32 %v1222, %v1226
    %v1231 = vsub.f32 %v1223, %v1229
    %v1232 = vmul.f32 %v1230, 1.442695
    %v1233 = vpow.pop %v1232
    %v1234 = vmul.f32 %v1231, 1.442695
    %v1235 = vpow.pop %v1234
    %v1236 = vsel %vm653, %v1233, 0.0
    %1237 = vadd.xlane.f32.xlu0 %v1236
    %v1238 = vpop.xlane.xlu0 %1237
    %v1239 = vsel %vm653, %v1235, 0.0
    %1240 = vadd.xlane.f32.xlu0 %v1239
    %v1241 = vpop.xlane.xlu0 %1240
    %v1242 = vrcp.pop %v1238
    %v1243 = vrcp.pop %v1241
    %v1244 = vmul.f32 %v1233, %v1242
    %v1245 = vmul.f32 %v1235, %v1243
    %v1246 = vpack.c.bf16 %v1244, %v1244
    %v1247 = vpack.c.bf16 %v1245, %v1245
    %1248 = vrot.lane.b32.xlu0 %v1176, 64
    %v1249 = vpop.permute.xlu0 %1248
    %v1251 = vsel %vm653, %v1246, 0
    %v1254 = vsel %vm683, %v1249, 0
    %1256 = vmatpush.bf16.msra.mxu0 0
    %1257 = vmatpush.bf16.msra.mxu0 0
    %1258 = vmatpush.bf16.msra.mxu0 0
    %1259 = vmatpush.bf16.msra.mxu0 0
    %1260 = vmatpush.bf16.msra.mxu0 0
    %1261 = vmatpush.bf16.msra.mxu0 0
    %1262 = vmatpush.bf16.msra.mxu0 0
    %1263 = vmatpush.bf16.msra.mxu0 %v1254
    %1264 = vmatmul.bf16.gmra.mxu0 %v1251
    %v1265 = vpop.f32.mrf.mxu0
    %v1266 = vadd.f32 0.0, %v1265
    %v1267 = vpop.f32.mrf.mxu0
    %1268 = vdwg.mxu0
    %1269 = vrot.lane.b32.xlu0 %v1200, 64
    %v1270 = vpop.permute.xlu0 %1269
    %v1272 = vsel %vm653, %v1247, 0
    %v1275 = vsel %vm683, %v1270, 0
    %1277 = vmatpush.bf16.msra.mxu0 0
    %1278 = vmatpush.bf16.msra.mxu0 0
    %1279 = vmatpush.bf16.msra.mxu0 0
    %1280 = vmatpush.bf16.msra.mxu0 0
    %1281 = vmatpush.bf16.msra.mxu0 0
    %1282 = vmatpush.bf16.msra.mxu0 0
    %1283 = vmatpush.bf16.msra.mxu0 0
    %1284 = vmatpush.bf16.msra.mxu0 %v1275
    %1285 = vmatmul.bf16.gmra.mxu0 %v1272
    %v1286 = vpop.f32.mrf.mxu0
    %v1287 = vadd.f32 0.0, %v1286
    %v1288 = vpop.f32.mrf.mxu0
    %1289 = vdwg.mxu0
    %v1290 = vpack.c.bf16 %v1266, %v1266
    %v1291 = vpack.c.bf16 %v1287, %v1287
    %1292 = vrot.lane.b32.xlu0 %v1176, 112
    %v1293 = vpop.permute.xlu0 %1292
    %1294 = vrot.lane.b32.xlu0 %v1176, 80
    %v1295 = vpop.permute.xlu0 %1294
    %v1297 = vsel %vm607, %v1293, 0
    %v1300 = vsel %vm607, %v1295, 0
    %1302 = vmatpush.bf16.xpose.msra.mxu0 0
    %1303 = vmatpush.bf16.xpose.msra.mxu0 0
    %1304 = vmatpush.bf16.xpose.msra.mxu0 0
    %1305 = vmatpush.bf16.xpose.msra.mxu0 0
    %1306 = vmatpush.bf16.xpose.msra.mxu0 0
    %1307 = vmatpush.bf16.xpose.msra.mxu0 0
    %1308 = vmatpush.bf16.xpose.msra.mxu0 0
    %1309 = vmatpush.bf16.xpose.msra.mxu0 %v1300
    %1310 = vmatmul.bf16.gmra.mxu0 %v1297
    %v1311 = vpop.f32.mrf.mxu0
    %v1312 = vadd.f32 0.0, %v1311
    %v1313 = vpop.f32.mrf.mxu0
    %1314 = vdwg.mxu0
    %1315 = vrot.lane.b32.xlu0 %v1200, 112
    %v1316 = vpop.permute.xlu0 %1315
    %1317 = vrot.lane.b32.xlu0 %v1200, 80
    %v1318 = vpop.permute.xlu0 %1317
    %v1320 = vsel %vm607, %v1316, 0
    %v1323 = vsel %vm607, %v1318, 0
    %1325 = vmatpush.bf16.xpose.msra.mxu0 0
    %1326 = vmatpush.bf16.xpose.msra.mxu0 0
    %1327 = vmatpush.bf16.xpose.msra.mxu0 0
    %1328 = vmatpush.bf16.xpose.msra.mxu0 0
    %1329 = vmatpush.bf16.xpose.msra.mxu0 0
    %1330 = vmatpush.bf16.xpose.msra.mxu0 0
    %1331 = vmatpush.bf16.xpose.msra.mxu0 0
    %1332 = vmatpush.bf16.xpose.msra.mxu0 %v1323
    %1333 = vmatmul.bf16.gmra.mxu0 %v1320
    %v1334 = vpop.f32.mrf.mxu0
    %v1335 = vadd.f32 0.0, %v1334
    %v1336 = vpop.f32.mrf.mxu0
    %1337 = vdwg.mxu0
    %v1338 = vsel %vm559, -1e+09, %v1312
    %v1339 = vsel %vm560, -1e+09, %v1335
    %v1340 = vsel %vm653, %v1338, -inf
    %1341 = vmax.xlane.f32.xlu0 %v1340
    %v1342 = vpop.xlane.xlu0 %1341
    %v1343 = vsel %vm653, %v1339, -inf
    %1344 = vmax.xlane.f32.xlu0 %v1343
    %v1345 = vpop.xlane.xlu0 %1344
    %v1346 = vsub.f32 %v1338, %v1342
    %v1347 = vsub.f32 %v1339, %v1345
    %v1348 = vmul.f32 %v1346, 1.442695
    %v1349 = vpow.pop %v1348
    %v1350 = vmul.f32 %v1347, 1.442695
    %v1351 = vpow.pop %v1350
    %v1352 = vsel %vm653, %v1349, 0.0
    %1353 = vadd.xlane.f32.xlu0 %v1352
    %v1354 = vpop.xlane.xlu0 %1353
    %v1355 = vsel %vm653, %v1351, 0.0
    %1356 = vadd.xlane.f32.xlu0 %v1355
    %v1357 = vpop.xlane.xlu0 %1356
    %v1358 = vrcp.pop %v1354
    %v1359 = vrcp.pop %v1357
    %v1360 = vmul.f32 %v1349, %v1358
    %v1361 = vmul.f32 %v1351, %v1359
    %v1362 = vpack.c.bf16 %v1360, %v1360
    %v1363 = vpack.c.bf16 %v1361, %v1361
    %1364 = vrot.lane.b32.xlu0 %v1176, 48
    %v1365 = vpop.permute.xlu0 %1364
    %v1367 = vsel %vm653, %v1362, 0
    %v1370 = vsel %vm683, %v1365, 0
    %1372 = vmatpush.bf16.msra.mxu0 0
    %1373 = vmatpush.bf16.msra.mxu0 0
    %1374 = vmatpush.bf16.msra.mxu0 0
    %1375 = vmatpush.bf16.msra.mxu0 0
    %1376 = vmatpush.bf16.msra.mxu0 0
    %1377 = vmatpush.bf16.msra.mxu0 0
    %1378 = vmatpush.bf16.msra.mxu0 0
    %1379 = vmatpush.bf16.msra.mxu0 %v1370
    %1380 = vmatmul.bf16.gmra.mxu0 %v1367
    %v1381 = vpop.f32.mrf.mxu0
    %v1382 = vadd.f32 0.0, %v1381
    %v1383 = vpop.f32.mrf.mxu0
    %1384 = vdwg.mxu0
    %1385 = vrot.lane.b32.xlu0 %v1200, 48
    %v1386 = vpop.permute.xlu0 %1385
    %v1388 = vsel %vm653, %v1363, 0
    %v1391 = vsel %vm683, %v1386, 0
    %1393 = vmatpush.bf16.msra.mxu0 0
    %1394 = vmatpush.bf16.msra.mxu0 0
    %1395 = vmatpush.bf16.msra.mxu0 0
    %1396 = vmatpush.bf16.msra.mxu0 0
    %1397 = vmatpush.bf16.msra.mxu0 0
    %1398 = vmatpush.bf16.msra.mxu0 0
    %1399 = vmatpush.bf16.msra.mxu0 0
    %1400 = vmatpush.bf16.msra.mxu0 %v1391
    %1401 = vmatmul.bf16.gmra.mxu0 %v1388
    %v1402 = vpop.f32.mrf.mxu0
    %v1403 = vadd.f32 0.0, %v1402
    %v1404 = vpop.f32.mrf.mxu0
    %1405 = vdwg.mxu0
    %v1406 = vpack.c.bf16 %v1382, %v1382
    %v1407 = vpack.c.bf16 %v1403, %v1403
    %v1410 = vunpack.c.l.b16 %v1406
    %v1411 = vunpack.c.l.b16 %v1407
    %v1412 = vpack.c.b16 %v1410, %v1410
    %v1413 = vpack.c.b16 %v1411, %v1411
    %1414 = vrot.lane.b32.xlu0 %v1412, 16
    %v1415 = vpop.permute.xlu0 %1414
    %1416 = vrot.lane.b32.xlu0 %v1413, 16
    %v1417 = vpop.permute.xlu0 %1416
    %v1420 = vsel %vm607, %v1290, %v1415
    %v1423 = vsel %vm607, %v1291, %v1417
    %s1424 = scalar_lea.vmem %s7, 16
    %v1425 = vld [vmem:[%s1424] sm:$0xf]
    %v1426 = vld [vmem:[%s1424 + $0x4] sm:$0xf]
    %v1427 = vld [vmem:[%s1424 + $0x8] sm:$0xf]
    %v1428 = vld [vmem:[%s1424 + $0xc] sm:$0xf]
    %s1429 = scalar_lea.vmem [#allocation8], 1
    %v1430 = vld [vmem:[%s1429] sm:$0x1]
    %v1432 = vperm.slane %v1430, 0
    %v1436 = vunpack.c.l.b16 %v1420
    %v1437 = vunpack.c.l.b16 %v1423
    %v1438 = vpack.c.b16 %v1437, %v1436
    %v1443 = vunpack.c.l.b16 %v1425
    %v1444 = vunpack.c.l.b16 %v1426
    %v1445 = vunpack.c.l.b16 %v1427
    %v1446 = vunpack.c.l.b16 %v1428
    %v1447 = vpack.c.b16 %v1444, %v1443
    %v1448 = vpack.c.b16 %v1446, %v1445
    %v1452 = vsel %vm582, %v1438, 0
    %1454 = vmatpush.bf16.msra.mxu0 0
    %1455 = vmatpush.bf16.msra.mxu0 0
    %1456 = vmatpush.bf16.msra.mxu0 0
    %1457 = vmatpush.bf16.msra.mxu0 0
    %1458 = vmatpush.bf16.msra.mxu0 0
    %1459 = vmatpush.bf16.msra.mxu0 0
    %1460 = vmatpush.bf16.msra.mxu0 %v1448
    %1461 = vmatpush.bf16.msra.mxu0 %v1447
    %1462 = vmatmul.bf16.gmra.mxu0 %v1452
    %v1463 = vpop.f32.mrf.mxu0
    %v1464 = vadd.f32 %v1432, %v1463
    %v1465 = vpop.f32.mrf.mxu0
    %v1466 = vadd.f32 %v1432, %v1465
    %1467 = vdwg.mxu0
    %v1468 = vadd.f32 %v1464, %v1135
    %v1469 = vadd.f32 %v1466, %v1136
    %s1470 = scalar_lea.vmem [#allocation10], 1
    %v1471 = vld [vmem:[%s1470] sm:$0x1]
    %s1472 = scalar_lea.vmem [#allocation11], 1
    %v1473 = vld [vmem:[%s1472] sm:$0x1]
    %v1474 = vsel %vm582, %v1468, 0.0
    %1475 = vadd.xlane.f32.xlu0 %v1474
    %v1476 = vpop.xlane.xlu0 %1475
    %v1477 = vsel %vm582, %v1469, 0.0
    %1478 = vadd.xlane.f32.xlu0 %v1477
    %v1479 = vpop.xlane.xlu0 %1478
    %v1480 = vmul.f32 %v1476, %v913
    %v1481 = vmul.f32 %v1479, %v913
    %v1482 = vsub.f32 %v1468, %v1480
    %v1483 = vsub.f32 %v1469, %v1481
    %v1484 = vmul.f32 %v1482, %v1482
    %v1485 = vmul.f32 %v1483, %v1483
    %v1486 = vsel %vm582, %v1484, 0.0
    %1487 = vadd.xlane.f32.xlu0 %v1486
    %v1488 = vpop.xlane.xlu0 %1487
    %v1489 = vsel %vm582, %v1485, 0.0
    %1490 = vadd.xlane.f32.xlu0 %v1489
    %v1491 = vpop.xlane.xlu0 %1490
    %v1492 = vmul.f32 %v1488, %v913
    %v1493 = vmul.f32 %v1491, %v913
    %v1494 = vadd.f32 %v1492, 1e-06
    %v1495 = vadd.f32 %v1493, 1e-06
    %v1496 = vrsqrt.pop %v1494
    %v1497 = vmul.f32 %v1496, %v1494
    %v1498 = vmul.f32 %v1497, %v1496
    %v1499 = vmul.f32 0.5, %v1498
    %v1500 = vsub.f32 1.5, %v1499
    %v1501 = vmul.f32 %v1496, %v1500
    %vm1502 = vweird.f32 %v1494
    %vm1503 = vweird.f32 %v1496
    %vm1504 = vmor %vm1502, %vm1503
    %v1505 = vsel %vm1504, %v1496, %v1501
    %v1506 = vrsqrt.pop %v1495
    %v1507 = vmul.f32 %v1506, %v1495
    %v1508 = vmul.f32 %v1507, %v1506
    %v1509 = vmul.f32 0.5, %v1508
    %v1510 = vsub.f32 1.5, %v1509
    %v1511 = vmul.f32 %v1506, %v1510
    %vm1512 = vweird.f32 %v1495
    %vm1513 = vweird.f32 %v1506
    %vm1514 = vmor %vm1512, %vm1513
    %v1515 = vsel %vm1514, %v1506, %v1511
    %v1516 = vmul.f32 %v1482, %v1505
    %v1517 = vmul.f32 %v1483, %v1515
    %v1519 = vperm.slane %v1471, 0
    %v1521 = vmul.f32 %v1516, %v1519
    %v1522 = vmul.f32 %v1517, %v1519
    %v1524 = vperm.slane %v1473, 0
    %v1526 = vadd.f32 %v1521, %v1524
    %v1527 = vadd.f32 %v1522, %v1524
    %v1528 = vmul.f32 %v1526, %v533
    %v1529 = vmul.f32 %v1527, %v538
    %v1530 = vpack.c.bf16 %v1529, %v1528
    %s1531 = scalar_lea.vmem %s11, 16
    %v1532 = vld [vmem:[%s1531] sm:$0xf]
    %v1533 = vld [vmem:[%s1531 + $0x4] sm:$0xf]
    %v1534 = vld [vmem:[%s1531 + $0x8] sm:$0xf]
    %v1535 = vld [vmem:[%s1531 + $0xc] sm:$0xf]
    %s1536 = scalar_lea.vmem [#allocation13], 1
    %v1537 = vld [vmem:[%s1536] sm:$0x1]
    %v1539 = vperm.slane %v1537, 0
    %v1545 = vunpack.c.l.b16 %v1532
    %v1546 = vunpack.c.l.b16 %v1533
    %v1547 = vunpack.c.l.b16 %v1534
    %v1548 = vunpack.c.l.b16 %v1535
    %v1549 = vpack.c.b16 %v1546, %v1545
    %v1550 = vpack.c.b16 %v1548, %v1547
    %v1554 = vsel %vm582, %v1530, 0
    %1556 = vmatpush.bf16.msra.mxu0 0
    %1557 = vmatpush.bf16.msra.mxu0 0
    %1558 = vmatpush.bf16.msra.mxu0 0
    %1559 = vmatpush.bf16.msra.mxu0 0
    %1560 = vmatpush.bf16.msra.mxu0 0
    %1561 = vmatpush.bf16.msra.mxu0 0
    %1562 = vmatpush.bf16.msra.mxu0 %v1550
    %1563 = vmatpush.bf16.msra.mxu0 %v1549
    %1564 = vmatmul.bf16.gmra.mxu0 %v1554
    %v1565 = vpop.f32.mrf.mxu0
    %v1566 = vadd.f32 %v1539, %v1565
    %v1567 = vpop.f32.mrf.mxu0
    %v1568 = vadd.f32 %v1539, %v1567
    %1569 = vdwg.mxu0
    %v1570 = vmul.f32 %v1566, 0.5
    %v1571 = vmul.f32 %v1568, 0.5
    %v1572 = vmul.f32 %v1566, 0.044715
    %v1573 = vmul.f32 %v1568, 0.044715
    %v1574 = vmul.f32 %v1572, %v1566
    %v1575 = vmul.f32 %v1573, %v1568
    %v1576 = vmul.f32 %v1574, %v1566
    %v1577 = vmul.f32 %v1575, %v1568
    %v1578 = vadd.f32 %v1566, %v1576
    %v1579 = vadd.f32 %v1568, %v1577
    %v1580 = vmul.f32 %v1578, 0.7978846
    %v1581 = vmul.f32 %v1579, 0.7978846
    %v1582 = vtanh.pop %v1580
    %v1583 = vtanh.pop %v1581
    %v1584 = vadd.f32 %v1582, 1.0
    %v1585 = vadd.f32 %v1583, 1.0
    %v1586 = vmul.f32 %v1570, %v1584
    %v1587 = vmul.f32 %v1571, %v1585
    %v1588 = vpack.c.bf16 %v1587, %v1586
    %s1589 = scalar_lea.vmem %s13, 32
    %v1590 = vld [vmem:[%s1589] sm:$0xf]
    %v1591 = vld [vmem:[%s1589 + $0x4] sm:$0xf]
    %v1592 = vld [vmem:[%s1589 + $0x8] sm:$0xf]
    %v1593 = vld [vmem:[%s1589 + $0xc] sm:$0xf]
    %v1594 = vld [vmem:[%s1589 + $0x10] sm:$0xf]
    %v1595 = vld [vmem:[%s1589 + $0x14] sm:$0xf]
    %v1596 = vld [vmem:[%s1589 + $0x18] sm:$0xf]
    %v1597 = vld [vmem:[%s1589 + $0x1c] sm:$0xf]
    %s1598 = scalar_lea.vmem [#allocation14], 1
    %v1599 = vld [vmem:[%s1598] sm:$0x1]
    %v1601 = vperm.slane %v1599, 0
    %v1611 = vunpack.c.l.b16 %v1590
    %v1612 = vunpack.c.l.b16 %v1591
    %v1613 = vunpack.c.l.b16 %v1592
    %v1614 = vunpack.c.l.b16 %v1593
    %v1615 = vunpack.c.l.b16 %v1594
    %v1616 = vunpack.c.l.b16 %v1595
    %v1617 = vunpack.c.l.b16 %v1596
    %v1618 = vunpack.c.l.b16 %v1597
    %v1619 = vpack.c.b16 %v1612, %v1611
    %v1620 = vpack.c.b16 %v1614, %v1613
    %v1621 = vpack.c.b16 %v1616, %v1615
    %v1622 = vpack.c.b16 %v1618, %v1617
    %v1628 = vsel %vm1057, %v1588, 0
    %1630 = vmatpush.bf16.msra.mxu0 0
    %1631 = vmatpush.bf16.msra.mxu0 0
    %1632 = vmatpush.bf16.msra.mxu0 0
    %1633 = vmatpush.bf16.msra.mxu0 0
    %1634 = vmatpush.bf16.msra.mxu0 %v1622
    %1635 = vmatpush.bf16.msra.mxu0 %v1621
    %1636 = vmatpush.bf16.msra.mxu0 %v1620
    %1637 = vmatpush.bf16.msra.mxu0 %v1619
    %1638 = vmatmul.bf16.gmra.mxu0 %v1628
    %v1639 = vpop.f32.mrf.mxu0
    %v1640 = vadd.f32 %v1601, %v1639
    %v1641 = vpop.f32.mrf.mxu0
    %v1642 = vadd.f32 %v1601, %v1641
    %1643 = vdwg.mxu0
    %v1644 = vadd.f32 %v1640, %v1528
    %v1645 = vadd.f32 %v1642, %v1529
    %s1646 = scalar_lea.vmem [#allocation16], 1
    %v1647 = vld [vmem:[%s1646] sm:$0x1]
    %s1648 = scalar_lea.vmem %s16, 1
    %v1649 = vld [vmem:[%s1648] sm:$0x1]
    %v1650 = vsel %vm582, %v1644, 0.0
    %1651 = vadd.xlane.f32.xlu0 %v1650
    %v1652 = vpop.xlane.xlu0 %1651
    %v1653 = vsel %vm582, %v1645, 0.0
    %1654 = vadd.xlane.f32.xlu0 %v1653
    %v1655 = vpop.xlane.xlu0 %1654
    %v1656 = vmul.f32 %v1652, %v913
    %v1657 = vmul.f32 %v1655, %v913
    %v1658 = vsub.f32 %v1644, %v1656
    %v1659 = vsub.f32 %v1645, %v1657
    %v1660 = vmul.f32 %v1658, %v1658
    %v1661 = vmul.f32 %v1659, %v1659
    %v1662 = vsel %vm582, %v1660, 0.0
    %1663 = vadd.xlane.f32.xlu0 %v1662
    %v1664 = vpop.xlane.xlu0 %1663
    %v1665 = vsel %vm582, %v1661, 0.0
    %1666 = vadd.xlane.f32.xlu0 %v1665
    %v1667 = vpop.xlane.xlu0 %1666
    %v1668 = vmul.f32 %v1664, %v913
    %v1669 = vmul.f32 %v1667, %v913
    %v1670 = vadd.f32 %v1668, 1e-06
    %v1671 = vadd.f32 %v1669, 1e-06
    %v1672 = vrsqrt.pop %v1670
    %v1673 = vmul.f32 %v1672, %v1670
    %v1674 = vmul.f32 %v1673, %v1672
    %v1675 = vmul.f32 0.5, %v1674
    %v1676 = vsub.f32 1.5, %v1675
    %v1677 = vmul.f32 %v1672, %v1676
    %vm1678 = vweird.f32 %v1670
    %vm1679 = vweird.f32 %v1672
    %vm1680 = vmor %vm1678, %vm1679
    %v1681 = vsel %vm1680, %v1672, %v1677
    %v1682 = vrsqrt.pop %v1671
    %v1683 = vmul.f32 %v1682, %v1671
    %v1684 = vmul.f32 %v1683, %v1682
    %v1685 = vmul.f32 0.5, %v1684
    %v1686 = vsub.f32 1.5, %v1685
    %v1687 = vmul.f32 %v1682, %v1686
    %vm1688 = vweird.f32 %v1671
    %vm1689 = vweird.f32 %v1682
    %vm1690 = vmor %vm1688, %vm1689
    %v1691 = vsel %vm1690, %v1682, %v1687
    %v1692 = vmul.f32 %v1658, %v1681
    %v1693 = vmul.f32 %v1659, %v1691
    %v1695 = vperm.slane %v1647, 0
    %v1697 = vmul.f32 %v1692, %v1695
    %v1698 = vmul.f32 %v1693, %v1695
    %v1700 = vperm.slane %v1649, 0
    %v1702 = vadd.f32 %v1697, %v1700
    %v1703 = vadd.f32 %v1698, %v1700
    %v1704 = vmul.f32 %v1702, %v533
    %v1705 = vmul.f32 %v1703, %v538
    %1706 = vst.msk [vmem:[#allocation17] sm:$0xff] %vm582, %v1704
    %1707 = vst.msk [vmem:[#allocation17 + $0x8] sm:$0xff] %vm582, %v1705
    // Predicated region
    $region106: #{tpu_custom_call.1} parent=1 // pred_check
      _
    $region107: #{tpu_custom_call.1} parent=1 // pred_check_branch
      %1709 = sbr.rel (0) target = $region109
    $region108: #{tpu_custom_call.1} parent=1 // pred_region
      %1711 = vsyncadd [#allocation4], 0
      %s1712 = sshll.u32 [#allocation17], 4
      %s1713 = int_to_ptr.vmem [resolvable:$true] %s1712
      %s1714 = sshll.u32 %s17, 4
      %s1715 = int_to_ptr.hbm [resolvable:$true] %s1714
      %1720 = dma.vmem_to_hbm [thread:$0]  %s1713, 256, %s1715, [#allocation4], 128, 128, 8
    $region109: #{tpu_custom_call.1} parent=1 // pred_fallthru
      _
    // Predicated region
    $region110: #{tpu_custom_call.1} parent=1 // pred_check
      _
    $region111: #{tpu_custom_call.1} parent=1 // pred_check_branch
      %1722 = sbr.rel (0) target = $region113
    $region112: #{tpu_custom_call.1} parent=1 // pred_region
      %1724 = dma.done [#allocation4], 256
    $region113: #{tpu_custom_call.1} parent=1 // pred_fallthru
      _
    %1725 = vsyncpa [#allocation3], 1
    %1726 = vsyncpa [#allocation6], 1
    %1727 = vsyncpa [#allocation9], 1
    %1728 = vsyncpa [#allocation12], 1
    %1729 = vsyncpa [#allocation15], 1
    %1730 = vsyncpa [#allocation4], 1

</llo_original>
